<compile_context>
chip_gen: v5e
topology: v5e:2x2
jax: 0.10.0
libtpu: 0.0.40
codegen_flags: <defaults>
</compile_context>

<pallas_src>
import functools

import jax
import jax.numpy as jnp
from jax import lax
from jax.experimental import pallas as pl
from jax.experimental.pallas import tpu as pltpu

LN_EPS = 1e-5  # nn.LayerNorm default eps


def _round_up(x, m):
    return (x + m - 1) // m * m


# ----------------------------- kernels -------------------------------------

def _layernorm_relu(h, gamma, beta, n_true):
    """Single-pass LayerNorm stats over the (zero-padded) lane axis + ReLU.

    Padded feature columns of h are exactly 0, so sum / sum-of-squares are unaffected;
    we divide by the true feature count n_true.
    """
    inv_n = 1.0 / float(n_true)
    s = jnp.sum(h, axis=-1, keepdims=True)
    ss = jnp.sum(h * h, axis=-1, keepdims=True)
    mean = s * inv_n
    var = jnp.maximum(ss * inv_n - mean * mean, 0.0)
    h = (h - mean) * lax.rsqrt(var + LN_EPS)
    h = h * gamma + beta          # padded columns: gamma=beta=0 -> stay 0
    return jnp.maximum(h, 0.0)


def _encoder_kernel_identity(x_ref, w_ref, b_ref, g_ref, be_ref, o_ref, *, out_dim):
    """in_dim == out_dim: residual is x itself. W is bf16, math/accum in f32."""
    x = x_ref[...]
    if x.dtype != jnp.float32:
        x = x.astype(jnp.float32)
    h = jnp.dot(x.astype(jnp.bfloat16), w_ref[...],
                preferred_element_type=jnp.float32) + b_ref[...]
    h = _layernorm_relu(h, g_ref[...], be_ref[...], out_dim)
    o_ref[...] = (h + x).astype(o_ref.dtype)


def _encoder_kernel_proj(x_ref, wcat_ref, bcat_ref, g_ref, be_ref, o_ref,
                         *, out_dim, out_pad):
    """in_dim != out_dim: main Linear and residual Linear fused into one matmul."""
    x = x_ref[...]
    if x.dtype != jnp.float32:
        x = x.astype(jnp.float32)
    y = jnp.dot(x.astype(jnp.bfloat16), wcat_ref[...],
                preferred_element_type=jnp.float32) + bcat_ref[...]
    h = y[:, :out_pad]            # lane-aligned split (out_pad is a multiple of 128)
    res = y[:, out_pad:]
    h = _layernorm_relu(h, g_ref[...], be_ref[...], out_dim)
    o_ref[...] = (h + res).astype(o_ref.dtype)


# ----------------------------- wrapper --------------------------------------

def encoder_block_forward(x, params, *, block_b=256, weight_dtype=jnp.bfloat16):
    """x: (B, in_dim) float32. params: dict of pre-transposed (in, out) weights."""
    B, in_dim = x.shape
    out_dim = params["w"].shape[1]
    has_residual = in_dim == out_dim

    # Lane-dense feature padding (multiples of 128), sublane-aligned batch tiling.
    in_pad = _round_up(in_dim, 128)
    out_pad = _round_up(out_dim, 128)
    block_b = _round_up(max(8, min(block_b, _round_up(B, 8))), 8)
    B_pad = _round_up(B, block_b)
    grid = (B_pad // block_b,)

    def pad2(a, r, c):
        return jnp.zeros((r, c), a.dtype).at[: a.shape[0], : a.shape[1]].set(a)

    x_p = jnp.zeros((B_pad, in_pad), x.dtype).at[:B, :in_dim].set(x)
    w = pad2(params["w"], in_pad, out_pad).astype(weight_dtype)
    b = pad2(params["b"], 1, out_pad)
    gamma = pad2(params["gamma"], 1, out_pad)
    beta = pad2(params["beta"], 1, out_pad)

    x_spec = pl.BlockSpec((block_b, in_pad), lambda i: (i, 0))
    out_spec = pl.BlockSpec((block_b, out_pad), lambda i: (i, 0))
    full2d = lambda r, c: pl.BlockSpec((r, c), lambda i: (0, 0))

    w_itemsize = jnp.dtype(weight_dtype).itemsize
    if has_residual:
        kernel = functools.partial(_encoder_kernel_identity, out_dim=out_dim)
        in_specs = [x_spec,
                    full2d(in_pad, out_pad),   # W   (in, out) bf16
                    full2d(1, out_pad),        # b
                    full2d(1, out_pad),        # gamma
                    full2d(1, out_pad)]        # beta
        operands = [x_p, w, b, gamma, beta]
        w_bytes = in_pad * out_pad * w_itemsize
    else:
        wr = pad2(params["wr"], in_pad, out_pad).astype(weight_dtype)
        br = pad2(params["br"], 1, out_pad)
        wcat = jnp.concatenate([w, wr], axis=1)        # (in_pad, 2*out_pad)
        bcat = jnp.concatenate([b, br], axis=1)        # (1, 2*out_pad)
        kernel = functools.partial(_encoder_kernel_proj, out_dim=out_dim, out_pad=out_pad)
        in_specs = [x_spec,
                    full2d(in_pad, 2 * out_pad),
                    full2d(1, 2 * out_pad),
                    full2d(1, out_pad),
                    full2d(1, out_pad)]
        operands = [x_p, wcat, bcat, gamma, beta]
        w_bytes = in_pad * 2 * out_pad * w_itemsize

    # Explicit VMEM budget: double-buffered x/out tiles + resident weights (+ slack),
    # clamped to [32 MiB, 64 MiB] so it is valid on v5e/v6e/v7x alike.
    tile_bytes = 2 * block_b * (in_pad + out_pad) * 4
    vmem_limit = int(min(64 << 20, max(32 << 20, 2 * (tile_bytes + w_bytes))))

    out_p = pl.pallas_call(
        kernel,
        out_shape=jax.ShapeDtypeStruct((B_pad, out_pad), x.dtype),
        grid_spec=pltpu.PrefetchScalarGridSpec(
            num_scalar_prefetch=0,
            grid=grid,
            in_specs=in_specs,
            out_specs=out_spec,
        ),
        compiler_params=pltpu.CompilerParams(
            dimension_semantics=("parallel",),
            vmem_limit_bytes=vmem_limit,
        ),
    )(*operands)
    return out_p[:B, :out_dim]


# ----------------------------- params ---------------------------------------

def init_params(key, in_dim, out_dim):
    """Deterministic init mimicking PyTorch nn.Linear defaults (uniform +/- 1/sqrt(fan_in))."""
    k1, k2, k3, k4 = jax.random.split(key, 4)
    bound = 1.0 / (in_dim ** 0.5)
    params = {
        # stored pre-transposed: (in_dim, out_dim)
        "w": jax.random.uniform(k1, (in_dim, out_dim), jnp.float32, -bound, bound),
        "b": jax.random.uniform(k2, (1, out_dim), jnp.float32, -bound, bound),
        "gamma": jnp.ones((1, out_dim), jnp.float32),
        "beta": jnp.zeros((1, out_dim), jnp.float32),
    }
    if in_dim != out_dim:
        params["wr"] = jax.random.uniform(k3, (in_dim, out_dim), jnp.float32, -bound, bound)
        params["br"] = jax.random.uniform(k4, (1, out_dim), jnp.float32, -bound, bound)
    return params


def reference_forward(x, params, weight_dtype=jnp.bfloat16):
    """Pure-JAX reference mirroring the PyTorch forward (eval mode), with the same
    bf16-weight / f32-accumulation matmul policy as the kernel."""
    xb = x.astype(weight_dtype)
    h = jnp.dot(xb, params["w"].astype(weight_dtype),
                preferred_element_type=jnp.float32) + params["b"]
    mean = jnp.mean(h, axis=-1, keepdims=True)
    var = jnp.mean(jnp.square(h - mean), axis=-1, keepdims=True)
    h = (h - mean) * lax.rsqrt(var + LN_EPS)
    h = h * params["gamma"] + params["beta"]
    h = jnp.maximum(h, 0.0)
    if "wr" in params:
        res = jnp.dot(xb, params["wr"].astype(weight_dtype),
                      preferred_element_type=jnp.float32) + params["br"]
    else:
        res = x
    return h + res


# ----------------------------- main ------------------------------------------

if __name__ == "__main__":
    key = jax.random.PRNGKey(0)
    kx1, kx2, kp1, kp2 = jax.random.split(key, 4)

    # Case 1: in_dim != out_dim -> fused residual-projection path.
    # B=384 with block_b=256 -> padded to 512, grid of 2 "parallel" steps.
    B1, in_dim, out_dim = 384, 48, 96
    x1 = jax.random.normal(kx1, (B1, in_dim), jnp.float32)
    params1 = init_params(kp1, in_dim, out_dim)
    out1 = jax.block_until_ready(encoder_block_forward(x1, params1))
    ref1 = reference_forward(x1, params1)
    assert out1.shape == (B1, out_dim)
    assert jnp.allclose(out1, ref1, atol=1e-3, rtol=1e-3), float(jnp.max(jnp.abs(out1 - ref1)))

    # Case 2: in_dim == out_dim -> identity residual path (non-tile-aligned batch).
    B2 = 200
    x2 = jax.random.normal(kx2, (B2, out_dim), jnp.float32)
    params2 = init_params(kp2, out_dim, out_dim)
    out2 = jax.block_until_ready(encoder_block_forward(x2, params2))
    ref2 = reference_forward(x2, params2)
    assert out2.shape == (B2, out_dim)
    assert jnp.allclose(out2, ref2, atol=1e-3, rtol=1e-3), float(jnp.max(jnp.abs(out2 - ref2)))

    print("KERNEL_OK")
</pallas_src>

<mosaic_0001>
module attributes {stable_mosaic.version = 11 : i64} {
  func.func @_encoder_kernel_proj(%arg0: i32, %arg1: memref<256x128xf32, #tpu.memory_space<vmem>>, %arg2: memref<128x256xbf16, #tpu.memory_space<vmem>>, %arg3: memref<1x256xf32, #tpu.memory_space<vmem>>, %arg4: memref<1x128xf32, #tpu.memory_space<vmem>>, %arg5: memref<1x128xf32, #tpu.memory_space<vmem>>, %arg6: memref<256x128xf32, #tpu.memory_space<vmem>>) attributes {dimension_semantics = [#tpu.dimension_semantics<parallel>], iteration_bounds = array<i64: 2>, scalar_prefetch = 0 : i64, scratch_operands = 0 : i64, tpu.core_type = #tpu.core_type<tc>, window_params = [{transform_indices = @transform_0, window_bounds = array<i64: 256, 128>}, {pipeline_mode = #tpu.pipeline_mode<synchronous>, transform_indices = @transform_1, window_bounds = array<i64: 128, 256>}, {pipeline_mode = #tpu.pipeline_mode<synchronous>, transform_indices = @transform_2, window_bounds = array<i64: 1, 256>}, {pipeline_mode = #tpu.pipeline_mode<synchronous>, transform_indices = @transform_3, window_bounds = array<i64: 1, 128>}, {pipeline_mode = #tpu.pipeline_mode<synchronous>, transform_indices = @transform_4, window_bounds = array<i64: 1, 128>}, {transform_indices = @transform_5, window_bounds = array<i64: 256, 128>}]} {
    %c0 = arith.constant 0 : index
    %c0_0 = arith.constant 0 : index
    %0 = vector.load %arg1[%c0, %c0_0] : memref<256x128xf32, #tpu.memory_space<vmem>>, vector<256x128xf32>
    %1 = arith.truncf %0 : vector<256x128xf32> to vector<256x128xbf16>
    %c0_1 = arith.constant 0 : index
    %c0_2 = arith.constant 0 : index
    %2 = vector.load %arg2[%c0_1, %c0_2] : memref<128x256xbf16, #tpu.memory_space<vmem>>, vector<128x256xbf16>
    %cst = arith.constant dense<0.000000e+00> : vector<256x256xf32>
    %3 = tpu.matmul %1, %2, %cst {dimension_numbers = #tpu.dot_dimension_numbers<[1], [0], [0], [1], [0, 0, 1, 1], [], []>} : vector<256x128xbf16>, vector<128x256xbf16>, vector<256x256xf32> -> vector<256x256xf32>
    %c0_3 = arith.constant 0 : index
    %c0_4 = arith.constant 0 : index
    %4 = vector.load %arg3[%c0_3, %c0_4] : memref<1x256xf32, #tpu.memory_space<vmem>>, vector<1x256xf32>
    %5 = vector.broadcast %4 : vector<1x256xf32> to vector<256x256xf32>
    %6 = arith.addf %3, %5 : vector<256x256xf32>
    %7 = vector.extract_strided_slice %6 {offsets = [0, 0], sizes = [256, 128], strides = [1, 1]} : vector<256x256xf32> to vector<256x128xf32>
    %8 = vector.extract_strided_slice %6 {offsets = [0, 128], sizes = [256, 128], strides = [1, 1]} : vector<256x256xf32> to vector<256x128xf32>
    %c0_5 = arith.constant 0 : index
    %c0_6 = arith.constant 0 : index
    %9 = vector.load %arg4[%c0_5, %c0_6] : memref<1x128xf32, #tpu.memory_space<vmem>>, vector<1x128xf32>
    %c0_7 = arith.constant 0 : index
    %c0_8 = arith.constant 0 : index
    %10 = vector.load %arg5[%c0_7, %c0_8] : memref<1x128xf32, #tpu.memory_space<vmem>>, vector<1x128xf32>
    %cst_9 = arith.constant dense<0.000000e+00> : vector<256xf32>
    %11 = vector.multi_reduction <add>, %7, %cst_9 [1] : vector<256x128xf32> to vector<256xf32>
    %12 = vector.shape_cast %11 : vector<256xf32> to vector<256x1xf32>
    %13 = arith.mulf %7, %7 : vector<256x128xf32>
    %cst_10 = arith.constant dense<0.000000e+00> : vector<256xf32>
    %14 = vector.multi_reduction <add>, %13, %cst_10 [1] : vector<256x128xf32> to vector<256xf32>
    %15 = vector.shape_cast %14 : vector<256xf32> to vector<256x1xf32>
    %cst_11 = arith.constant 0.010416667 : f32
    %16 = vector.broadcast %cst_11 : f32 to vector<256x1xf32>
    %17 = arith.mulf %12, %16 : vector<256x1xf32>
    %cst_12 = arith.constant 0.010416667 : f32
    %18 = vector.broadcast %cst_12 : f32 to vector<256x1xf32>
    %19 = arith.mulf %15, %18 : vector<256x1xf32>
    %20 = arith.mulf %17, %17 : vector<256x1xf32>
    %21 = arith.subf %19, %20 : vector<256x1xf32>
    %cst_13 = arith.constant 0.000000e+00 : f32
    %22 = vector.broadcast %cst_13 : f32 to vector<256x1xf32>
    %23 = arith.maximumf %21, %22 : vector<256x1xf32>
    %24 = vector.broadcast %17 : vector<256x1xf32> to vector<256x128xf32>
    %25 = arith.subf %7, %24 : vector<256x128xf32>
    %cst_14 = arith.constant 9.99999974E-6 : f32
    %26 = vector.broadcast %cst_14 : f32 to vector<256x1xf32>
    %27 = arith.addf %23, %26 : vector<256x1xf32>
    %28 = math.rsqrt %27 : vector<256x1xf32>
    %29 = vector.broadcast %28 : vector<256x1xf32> to vector<256x128xf32>
    %30 = arith.mulf %25, %29 : vector<256x128xf32>
    %31 = vector.broadcast %9 : vector<1x128xf32> to vector<256x128xf32>
    %32 = arith.mulf %30, %31 : vector<256x128xf32>
    %33 = vector.broadcast %10 : vector<1x128xf32> to vector<256x128xf32>
    %34 = arith.addf %32, %33 : vector<256x128xf32>
    %cst_15 = arith.constant 0.000000e+00 : f32
    %35 = vector.broadcast %cst_15 : f32 to vector<256x128xf32>
    %36 = arith.maximumf %34, %35 : vector<256x128xf32>
    %37 = arith.addf %36, %8 : vector<256x128xf32>
    %c0_16 = arith.constant 0 : index
    %c0_17 = arith.constant 0 : index
    %38 = vector.load %arg6[%c0_16, %c0_17] : memref<256x128xf32, #tpu.memory_space<vmem>>, vector<256x128xf32>
    tpu.vector_store %arg6[%c0_16, %c0_17], %37 {strides = array<i32>} : memref<256x128xf32, #tpu.memory_space<vmem>>, vector<256x128xf32>,
    return
  }
  func.func @transform_0(%arg0: i32) -> (i32, i32) {
    %c0_i32 = arith.constant 0 : i32
    %c0_i32_0 = arith.constant 0 : i32
    return %arg0, %c0_i32 : i32, i32
  }
  func.func @transform_1(%arg0: i32) -> (i32, i32) {
    %c0_i32 = arith.constant 0 : i32
    %c0_i32_0 = arith.constant 0 : i32
    %c0_i32_1 = arith.constant 0 : i32
    return %c0_i32, %c0_i32_0 : i32, i32
  }
  func.func @transform_2(%arg0: i32) -> (i32, i32) {
    %c0_i32 = arith.constant 0 : i32
    %c0_i32_0 = arith.constant 0 : i32
    %c0_i32_1 = arith.constant 0 : i32
    return %c0_i32, %c0_i32_0 : i32, i32
  }
  func.func @transform_3(%arg0: i32) -> (i32, i32) {
    %c0_i32 = arith.constant 0 : i32
    %c0_i32_0 = arith.constant 0 : i32
    %c0_i32_1 = arith.constant 0 : i32
    return %c0_i32, %c0_i32_0 : i32, i32
  }
  func.func @transform_4(%arg0: i32) -> (i32, i32) {
    %c0_i32 = arith.constant 0 : i32
    %c0_i32_0 = arith.constant 0 : i32
    %c0_i32_1 = arith.constant 0 : i32
    return %c0_i32, %c0_i32_0 : i32, i32
  }
  func.func @transform_5(%arg0: i32) -> (i32, i32) {
    %c0_i32 = arith.constant 0 : i32
    %c0_i32_0 = arith.constant 0 : i32
    return %arg0, %c0_i32 : i32, i32
  }
}

</mosaic_0001>

<llo_original>
// kernel: tpu_custom_call.1
$region0: #{tpu_custom_call.1}
  #allocation0 [shape = 'u32[]', space=smem, size = 0x4, offset = 0x4, fixed_abs, tag = 'smem constant byte address 0x4 - core index']
  #allocation1 [shape = 'u32[72,128]{1,0:T(1,128)}', space=vmem, size = 0x9000, scoped, tag = 'internal scratch']
  %s0 = inlined_call_operand.hbm [shape: f32[512,128], index: 0, kind: input, shape index: {}]
  %s1 = inlined_call_operand.hbm [shape: bf16[128,256], index: 1, kind: input, shape index: {}]
  %s2 = inlined_call_operand.hbm [shape: f32[1,256], index: 2, kind: input, shape index: {}]
  %s3 = inlined_call_operand.vmem [shape: f32[1,128], index: 3, kind: input, shape index: {}]
  %s4 = inlined_call_operand.vmem [shape: f32[1,128], index: 4, kind: input, shape index: {}]
  %s5 = inlined_call_operand.hbm [shape: f32[512,128], index: 5, kind: output, shape index: {}]
  %s6 = sld [smem:[#allocation0]]
  $region65: #{tpu_custom_call.1} parent=0
    _
  %s8 = ssub.s32 1, %s6
  %s9 = scalar_select 0, %s8, %s6
  $region1: #{tpu_custom_call.1} parent=0
    #allocation2 [shape = 'u8[262144]{0}', space=vmem, size = 0x40000, scoped, tag = 'input window, operand 0']
    #allocation3 [shape = 's32[2]{0}', space=sflag, size = 0x8, scoped, tag = 'scoped memory for tpu_custom_call.1']
    #allocation4 [shape = 's32[2]{0}', space=sflag, size = 0x8, scoped, tag = 'scoped memory for tpu_custom_call.1']
    #allocation5 [shape = 'u8[65536]{0}', space=vmem, size = 0x10000, scoped, tag = 'input window, operand 1, single buffered']
    #allocation6 [shape = 's32[1]{0}', space=sflag, size = 0x4, scoped, tag = 'scoped memory for tpu_custom_call.1']
    #allocation7 [shape = 'u8[1024]{0}', space=vmem, size = 0x400, scoped, tag = 'input window, operand 2, single buffered']
    #allocation8 [shape = 'u8[262144]{0}', space=vmem, size = 0x40000, scoped, tag = 'output window, operand 0']
    %10 = vsyncpa [#allocation3], 0
    %s11 = scalar_lea.sflag [#allocation3], 1
    %12 = vsyncpa %s11, 0
    %13 = vsyncpa [#allocation6], 0
    %14 = vsyncpa [#allocation4], 0
    %s15 = scalar_lea.sflag [#allocation4], 1
    %16 = vsyncpa %s15, 0
    loop: start=0, step=1, limit=4
    $region2: #{tpu_custom_call.1} parent=1 // loop_pre_header
      _
    $region3: #{tpu_custom_call.1} parent=1 // loop_header
      %s18 = sphi 0, %s22
      %p19 = scmp.ge.s32.totalorder %s18, 4
      %s28 = sphi 0, %s30
      %s31 = sphi 0, %s28
      %s32 = sphi 0, %s31
      %s48 = sphi 0, %s32
      %s52 = sphi 0, %s52
      %s54 = sphi 0, %s52
      %s55 = sphi 0, %s54
      %s69 = sphi 0, %s55
      %s73 = sphi 0, %s73
      %s75 = sphi 0, %s73
      %s76 = sphi 0, %s75
      %s90 = sphi 0, %s76
      %s94 = sphi 0, %s94
      %s96 = sphi 0, %s94
      %s97 = sphi 0, %s96
      %s111 = sphi 0, %s97
      %s115 = sphi 0, %s115
      %s117 = sphi 0, %s115
      %s118 = sphi 0, %s117
      %s132 = sphi 0, %s118
      %s138 = sphi 0, %s140
      %s141 = sphi 0, %s138
      %s142 = sphi 0, %s141
      %s158 = sphi 0, %s142
    $region4: #{tpu_custom_call.1} parent=1 // loop_header_branch
      %21 = sbr.rel (%p19) target = $region8
    $region5: #{tpu_custom_call.1} parent=1 // loop_body
      %s23 = ssub.s32 %s18, 1
      %s24 = ssub.s32 %s18, 2
      %s25 = sadd.s32 %s18, 1
      %s26 = ssub.s32 %s18, %s25
      %p27 = scmp.eq.s32.totalorder %s26, 0
      %s29 = sadd.s32 %s28, 1
      %s30 = scalar_select %p27, %s28, %s29
      %p33 = pneg %p27
      %p34 = scmp.eq.s32.totalorder %s18, 1
      %p35 = por %p33, %p34
      %p36 = scmp.ne.s32.totalorder %s28, %s31
      %p37 = scmp.eq.s32.totalorder %s18, 0
      %p38 = por %p36, %p37
      %p39 = scmp.ne.s32.totalorder %s28, %s31
      %p40 = scmp.eq.s32.totalorder %s23, 1
      %p41 = por %p39, %p40
      %p42 = scmp.ne.s32.totalorder %s31, %s32
      %p43 = scmp.eq.s32.totalorder %s23, 0
      %p44 = por %p42, %p43
      %p45 = scmp.ne.s32.totalorder %s31, %s32
      %p46 = scmp.eq.s32.totalorder %s24, 1
      %p47 = por %p45, %p46
      %p49 = scmp.ne.s32.totalorder %s32, %s48
      %p50 = scmp.eq.s32.totalorder %s24, 0
      %p51 = por %p49, %p50
      %s53 = sadd.s32 %s52, 1
      %p56 = scmp.eq.s32.totalorder %s18, 1
      %p57 = scmp.ne.s32.totalorder %s52, %s54
      %p58 = scmp.eq.s32.totalorder %s18, 0
      %p59 = por %p57, %p58
      %p60 = scmp.ne.s32.totalorder %s52, %s54
      %p61 = scmp.eq.s32.totalorder %s23, 1
      %p62 = por %p60, %p61
      %p63 = scmp.ne.s32.totalorder %s54, %s55
      %p64 = scmp.eq.s32.totalorder %s23, 0
      %p65 = por %p63, %p64
      %p66 = scmp.ne.s32.totalorder %s54, %s55
      %p67 = scmp.eq.s32.totalorder %s24, 1
      %p68 = por %p66, %p67
      %p70 = scmp.ne.s32.totalorder %s55, %s69
      %p71 = scmp.eq.s32.totalorder %s24, 0
      %p72 = por %p70, %p71
      %s74 = sadd.s32 %s73, 1
      %p77 = scmp.eq.s32.totalorder %s18, 1
      %p78 = scmp.ne.s32.totalorder %s73, %s75
      %p79 = scmp.eq.s32.totalorder %s18, 0
      %p80 = por %p78, %p79
      %p81 = scmp.ne.s32.totalorder %s73, %s75
      %p82 = scmp.eq.s32.totalorder %s23, 1
      %p83 = por %p81, %p82
      %p84 = scmp.ne.s32.totalorder %s75, %s76
      %p85 = scmp.eq.s32.totalorder %s23, 0
      %p86 = por %p84, %p85
      %p87 = scmp.ne.s32.totalorder %s75, %s76
      %p88 = scmp.eq.s32.totalorder %s24, 1
      %p89 = por %p87, %p88
      %p91 = scmp.ne.s32.totalorder %s76, %s90
      %p92 = scmp.eq.s32.totalorder %s24, 0
      %p93 = por %p91, %p92
      %s95 = sadd.s32 %s94, 1
      %p98 = scmp.eq.s32.totalorder %s18, 1
      %p99 = scmp.ne.s32.totalorder %s94, %s96
      %p100 = scmp.eq.s32.totalorder %s18, 0
      %p101 = por %p99, %p100
      %p102 = scmp.ne.s32.totalorder %s94, %s96
      %p103 = scmp.eq.s32.totalorder %s23, 1
      %p104 = por %p102, %p103
      %p105 = scmp.ne.s32.totalorder %s96, %s97
      %p106 = scmp.eq.s32.totalorder %s23, 0
      %p107 = por %p105, %p106
      %p108 = scmp.ne.s32.totalorder %s96, %s97
      %p109 = scmp.eq.s32.totalorder %s24, 1
      %p110 = por %p108, %p109
      %p112 = scmp.ne.s32.totalorder %s97, %s111
      %p113 = scmp.eq.s32.totalorder %s24, 0
      %p114 = por %p112, %p113
      %s116 = sadd.s32 %s115, 1
      %p119 = scmp.eq.s32.totalorder %s18, 1
      %p120 = scmp.ne.s32.totalorder %s115, %s117
      %p121 = scmp.eq.s32.totalorder %s18, 0
      %p122 = por %p120, %p121
      %p123 = scmp.ne.s32.totalorder %s115, %s117
      %p124 = scmp.eq.s32.totalorder %s23, 1
      %p125 = por %p123, %p124
      %p126 = scmp.ne.s32.totalorder %s117, %s118
      %p127 = scmp.eq.s32.totalorder %s23, 0
      %p128 = por %p126, %p127
      %p129 = scmp.ne.s32.totalorder %s117, %s118
      %p130 = scmp.eq.s32.totalorder %s24, 1
      %p131 = por %p129, %p130
      %p133 = scmp.ne.s32.totalorder %s118, %s132
      %p134 = scmp.eq.s32.totalorder %s24, 0
      %p135 = por %p133, %p134
      %s136 = ssub.s32 %s18, %s25
      %p137 = scmp.eq.s32.totalorder %s136, 0
      %s139 = sadd.s32 %s138, 1
      %s140 = scalar_select %p137, %s138, %s139
      %p143 = pneg %p137
      %p144 = scmp.eq.s32.totalorder %s18, 1
      %p145 = por %p143, %p144
      %p146 = scmp.ne.s32.totalorder %s138, %s141
      %p147 = scmp.eq.s32.totalorder %s18, 0
      %p148 = por %p146, %p147
      %p149 = scmp.ne.s32.totalorder %s138, %s141
      %p150 = scmp.eq.s32.totalorder %s23, 1
      %p151 = por %p149, %p150
      %p152 = scmp.ne.s32.totalorder %s141, %s142
      %p153 = scmp.eq.s32.totalorder %s23, 0
      %p154 = por %p152, %p153
      %p155 = scmp.ne.s32.totalorder %s141, %s142
      %p156 = scmp.eq.s32.totalorder %s24, 1
      %p157 = por %p155, %p156
      %p159 = scmp.ne.s32.totalorder %s142, %s158
      %p160 = scmp.eq.s32.totalorder %s24, 0
      %p161 = por %p159, %p160
      %p162 = scmp.le.s32.totalorder 1, %s18
      %p163 = scmp.lt.s32.totalorder %s18, 3
      %p164 = pnand %p162, %p163
      %p165 = pneg %p164
      // Predicated region
      $region9: #{tpu_custom_call.1} parent=5 // pred_check
        _
      $region10: #{tpu_custom_call.1} parent=5 // pred_check_branch
        %167 = sbr.rel (%p164) target = $region12
      $region11: #{tpu_custom_call.1} parent=5 // pred_region
        %s168 = ssub.s32 %s18, 1
        // Predicated region
        $region13: #{tpu_custom_call.1} parent=11 // pred_check
          %p169 = pneg %p65
        $region14: #{tpu_custom_call.1} parent=11 // pred_check_branch
          %171 = sbr.rel (%p169) target = $region16
        $region15: #{tpu_custom_call.1} parent=11 // pred_region
          %173 = vsyncadd [#allocation6], 0
          %s174 = sshll.u32 %s1, 4
          %s175 = int_to_ptr.hbm [resolvable:$true] %s174
          %s176 = sshll.u32 [#allocation5], 4
          %s177 = int_to_ptr.vmem [resolvable:$true] %s176
          %182 = dma.hbm_to_vmem [thread:$0]  %s175, 2048, %s177, [#allocation6], 128, 128, 8
        $region16: #{tpu_custom_call.1} parent=11 // pred_fallthru
          _
        // Predicated region
        $region17: #{tpu_custom_call.1} parent=11 // pred_check
          %p183 = pneg %p86
        $region18: #{tpu_custom_call.1} parent=11 // pred_check_branch
          %185 = sbr.rel (%p183) target = $region20
        $region19: #{tpu_custom_call.1} parent=11 // pred_region
          %187 = vsyncadd [#allocation6], 0
          %s189 = sshll.u32 %s2, 4
          %s190 = int_to_ptr.hbm [resolvable:$true] %s189
          %s191 = sshll.u32 [#allocation7], 4
          %s192 = int_to_ptr.vmem [resolvable:$true] %s191
          %194 = dma.hbm_to_vmem [thread:$0]  %s190, 32, %s192, [#allocation6]
        $region20: #{tpu_custom_call.1} parent=11 // pred_fallthru
          _
        // Predicated region
        $region21: #{tpu_custom_call.1} parent=11 // pred_check
          %p195 = pneg %p107
        $region22: #{tpu_custom_call.1} parent=11 // pred_check_branch
          %197 = sbr.rel (%p195) target = $region24
        $region23: #{tpu_custom_call.1} parent=11 // pred_region
          _
        $region24: #{tpu_custom_call.1} parent=11 // pred_fallthru
          _
        // Predicated region
        $region25: #{tpu_custom_call.1} parent=11 // pred_check
          %p198 = pneg %p128
        $region26: #{tpu_custom_call.1} parent=11 // pred_check_branch
          %200 = sbr.rel (%p198) target = $region28
        $region27: #{tpu_custom_call.1} parent=11 // pred_region
          _
        $region28: #{tpu_custom_call.1} parent=11 // pred_fallthru
          _
      $region12: #{tpu_custom_call.1} parent=5 // pred_fallthru
        _
      %p201 = scmp.lt.s32.totalorder %s18, 2
      // Predicated region
      $region29: #{tpu_custom_call.1} parent=5 // pred_check
        %p202 = pneg %p201
      $region30: #{tpu_custom_call.1} parent=5 // pred_check_branch
        %204 = sbr.rel (%p202) target = $region32
      $region31: #{tpu_custom_call.1} parent=5 // pred_region
        // Predicated region
        $region33: #{tpu_custom_call.1} parent=31 // pred_check
          %p205 = pneg %p38
        $region34: #{tpu_custom_call.1} parent=31 // pred_check_branch
          %207 = sbr.rel (%p205) target = $region36
        $region35: #{tpu_custom_call.1} parent=31 // pred_region
          %s208 = sand.u32 %s28, 1
          %s209 = scalar_lea.sflag [#allocation3], %s208
          %s210 = sand.u32 %s28, 1
          %s211 = smul.addr %s210, 256
          %s212 = scalar_lea.vmem [#allocation2], %s211
          %s213 = smul.u32 32, %s18
          %215 = vsyncadd %s209, 0
          %s216 = smul.addr %s213, 8
          %s217 = scalar_lea.hbm %s0, %s216
          %s218 = sshll.u32 %s217, 4
          %s219 = int_to_ptr.hbm [resolvable:$true] %s218
          %s220 = sshll.u32 %s212, 4
          %s221 = int_to_ptr.vmem [resolvable:$true] %s220
          %226 = dma.hbm_to_vmem [thread:$0]  %s219, 4096, %s221, %s209, 128, 128, 8
        $region36: #{tpu_custom_call.1} parent=31 // pred_fallthru
          _
      $region32: #{tpu_custom_call.1} parent=5 // pred_fallthru
        _
      %p227 = scmp.le.s32.totalorder 1, %s18
      %p228 = scmp.lt.s32.totalorder %s18, 3
      %p229 = pnand %p227, %p228
      %p230 = pneg %p229
      // Predicated region
      $region37: #{tpu_custom_call.1} parent=5 // pred_check
        _
      $region38: #{tpu_custom_call.1} parent=5 // pred_check_branch
        %232 = sbr.rel (%p229) target = $region40
      $region39: #{tpu_custom_call.1} parent=5 // pred_region
        %s233 = ssub.s32 %s18, 1
        %s234 = sand.u32 %s31, 1
        %s235 = scalar_lea.sflag [#allocation3], %s234
        %s236 = sand.u32 %s31, 1
        %s237 = smul.addr %s236, 256
        %s238 = scalar_lea.vmem [#allocation2], %s237
        // Predicated region
        $region41: #{tpu_custom_call.1} parent=39 // pred_check
          %p239 = pneg %p44
        $region42: #{tpu_custom_call.1} parent=39 // pred_check_branch
          %241 = sbr.rel (%p239) target = $region44
        $region43: #{tpu_custom_call.1} parent=39 // pred_region
          %243 = dma.done %s235, 4096
        $region44: #{tpu_custom_call.1} parent=39 // pred_fallthru
          _
        // Predicated region
        $region45: #{tpu_custom_call.1} parent=39 // pred_check
          %p244 = pneg %p65
        $region46: #{tpu_custom_call.1} parent=39 // pred_check_branch
          %246 = sbr.rel (%p244) target = $region48
        $region47: #{tpu_custom_call.1} parent=39 // pred_region
          %248 = dma.done [#allocation6], 2048
        $region48: #{tpu_custom_call.1} parent=39 // pred_fallthru
          _
        // Predicated region
        $region49: #{tpu_custom_call.1} parent=39 // pred_check
          %p249 = pneg %p86
        $region50: #{tpu_custom_call.1} parent=39 // pred_check_branch
          %251 = sbr.rel (%p249) target = $region52
        $region51: #{tpu_custom_call.1} parent=39 // pred_region
          %253 = dma.done [#allocation6], 32
        $region52: #{tpu_custom_call.1} parent=39 // pred_fallthru
          _
        %s254 = sand.u32 %s31, 1
        %s255 = scalar_lea.sflag [#allocation3], %s254
        %s256 = sand.u32 %s31, 1
        %s257 = smul.addr %s256, 256
        %s258 = scalar_lea.vmem [#allocation2], %s257
        %p259 = pneg %p44
        %p260 = pneg %p41
        %p261 = pneg %p65
        %p262 = pneg %p62
        %p263 = pneg %p86
        %p264 = pneg %p83
        %p265 = pneg %p107
        %p266 = pneg %p104
        %p267 = pneg %p128
        %p268 = pneg %p125
        %p269 = pneg %p154
        %p270 = pneg %p151
        %s271 = sand.u32 %s141, 1
        %s272 = scalar_lea.sflag [#allocation4], %s271
        %s273 = sand.u32 %s141, 1
        %s274 = smul.addr %s273, 256
        %s275 = scalar_lea.vmem [#allocation8], %s274
        %s276 = smul.u32 32, %s23
        %s277 = smul.u32 32, %s23
        %v278 = vld [vmem:[%s238] sm:$0xff]
        %v279 = vld [vmem:[%s238 + $0x8] sm:$0xff]
        %v280 = vld [vmem:[%s238 + $0x10] sm:$0xff]
        %v281 = vld [vmem:[%s238 + $0x18] sm:$0xff]
        %v282 = vld [vmem:[%s238 + $0x20] sm:$0xff]
        %v283 = vld [vmem:[%s238 + $0x28] sm:$0xff]
        %v284 = vld [vmem:[%s238 + $0x30] sm:$0xff]
        %v285 = vld [vmem:[%s238 + $0x38] sm:$0xff]
        %v286 = vld [vmem:[%s238 + $0x40] sm:$0xff]
        %v287 = vld [vmem:[%s238 + $0x48] sm:$0xff]
        %v288 = vld [vmem:[%s238 + $0x50] sm:$0xff]
        %v289 = vld [vmem:[%s238 + $0x58] sm:$0xff]
        %v290 = vld [vmem:[%s238 + $0x60] sm:$0xff]
        %v291 = vld [vmem:[%s238 + $0x68] sm:$0xff]
        %v292 = vld [vmem:[%s238 + $0x70] sm:$0xff]
        %v293 = vld [vmem:[%s238 + $0x78] sm:$0xff]
        %v294 = vld [vmem:[%s238 + $0x80] sm:$0xff]
        %v295 = vld [vmem:[%s238 + $0x88] sm:$0xff]
        %v296 = vld [vmem:[%s238 + $0x90] sm:$0xff]
        %v297 = vld [vmem:[%s238 + $0x98] sm:$0xff]
        %v298 = vld [vmem:[%s238 + $0xa0] sm:$0xff]
        %v299 = vld [vmem:[%s238 + $0xa8] sm:$0xff]
        %v300 = vld [vmem:[%s238 + $0xb0] sm:$0xff]
        %v301 = vld [vmem:[%s238 + $0xb8] sm:$0xff]
        %v302 = vld [vmem:[%s238 + $0xc0] sm:$0xff]
        %v303 = vld [vmem:[%s238 + $0xc8] sm:$0xff]
        %v304 = vld [vmem:[%s238 + $0xd0] sm:$0xff]
        %v305 = vld [vmem:[%s238 + $0xd8] sm:$0xff]
        %v306 = vld [vmem:[%s238 + $0xe0] sm:$0xff]
        %v307 = vld [vmem:[%s238 + $0xe8] sm:$0xff]
        %v308 = vld [vmem:[%s238 + $0xf0] sm:$0xff]
        %v309 = vld [vmem:[%s238 + $0xf8] sm:$0xff]
        %v310 = vpack.c.bf16 %v279, %v278
        %v311 = vpack.c.bf16 %v281, %v280
        %v312 = vpack.c.bf16 %v283, %v282
        %v313 = vpack.c.bf16 %v285, %v284
        %v314 = vpack.c.bf16 %v287, %v286
        %v315 = vpack.c.bf16 %v289, %v288
        %v316 = vpack.c.bf16 %v291, %v290
        %v317 = vpack.c.bf16 %v293, %v292
        %v318 = vpack.c.bf16 %v295, %v294
        %v319 = vpack.c.bf16 %v297, %v296
        %v320 = vpack.c.bf16 %v299, %v298
        %v321 = vpack.c.bf16 %v301, %v300
        %v322 = vpack.c.bf16 %v303, %v302
        %v323 = vpack.c.bf16 %v305, %v304
        %v324 = vpack.c.bf16 %v307, %v306
        %v325 = vpack.c.bf16 %v309, %v308
        %v326 = vld [vmem:[#allocation5] sm:$0xff]
        %v327 = vld [vmem:[#allocation5 + $0x8] sm:$0xff]
        %v328 = vld [vmem:[#allocation5 + $0x10] sm:$0xff]
        %v329 = vld [vmem:[#allocation5 + $0x18] sm:$0xff]
        %v330 = vld [vmem:[#allocation5 + $0x20] sm:$0xff]
        %v331 = vld [vmem:[#allocation5 + $0x28] sm:$0xff]
        %v332 = vld [vmem:[#allocation5 + $0x30] sm:$0xff]
        %v333 = vld [vmem:[#allocation5 + $0x38] sm:$0xff]
        %v334 = vld [vmem:[#allocation5 + $0x40] sm:$0xff]
        %v335 = vld [vmem:[#allocation5 + $0x48] sm:$0xff]
        %v336 = vld [vmem:[#allocation5 + $0x50] sm:$0xff]
        %v337 = vld [vmem:[#allocation5 + $0x58] sm:$0xff]
        %v338 = vld [vmem:[#allocation5 + $0x60] sm:$0xff]
        %v339 = vld [vmem:[#allocation5 + $0x68] sm:$0xff]
        %v340 = vld [vmem:[#allocation5 + $0x70] sm:$0xff]
        %v341 = vld [vmem:[#allocation5 + $0x78] sm:$0xff]
        %v342 = vld [vmem:[#allocation7] sm:$0x3]
        %v344 = vperm.slane %v342, 0
        %v345 = vperm.slane %v342, 1
        %v364 = vunpack.c.l.b16 %v326
        %v365 = vunpack.c.h.b16 %v326
        %v366 = vunpack.c.l.b16 %v327
        %v367 = vunpack.c.h.b16 %v327
        %v368 = vunpack.c.l.b16 %v328
        %v369 = vunpack.c.h.b16 %v328
        %v370 = vunpack.c.l.b16 %v329
        %v371 = vunpack.c.h.b16 %v329
        %v372 = vunpack.c.l.b16 %v330
        %v373 = vunpack.c.h.b16 %v330
        %v374 = vunpack.c.l.b16 %v331
        %v375 = vunpack.c.h.b16 %v331
        %v376 = vunpack.c.l.b16 %v332
        %v377 = vunpack.c.h.b16 %v332
        %v378 = vunpack.c.l.b16 %v333
        %v379 = vunpack.c.h.b16 %v333
        %v380 = vunpack.c.l.b16 %v334
        %v381 = vunpack.c.h.b16 %v334
        %v382 = vunpack.c.l.b16 %v335
        %v383 = vunpack.c.h.b16 %v335
        %v384 = vunpack.c.l.b16 %v336
        %v385 = vunpack.c.h.b16 %v336
        %v386 = vunpack.c.l.b16 %v337
        %v387 = vunpack.c.h.b16 %v337
        %v388 = vunpack.c.l.b16 %v338
        %v389 = vunpack.c.h.b16 %v338
        %v390 = vunpack.c.l.b16 %v339
        %v391 = vunpack.c.h.b16 %v339
        %v392 = vunpack.c.l.b16 %v340
        %v393 = vunpack.c.h.b16 %v340
        %v394 = vunpack.c.l.b16 %v341
        %v395 = vunpack.c.h.b16 %v341
        %v396 = vpack.c.b16 %v366, %v364
        %v397 = vpack.c.b16 %v367, %v365
        %v398 = vpack.c.b16 %v370, %v368
        %v399 = vpack.c.b16 %v371, %v369
        %v400 = vpack.c.b16 %v374, %v372
        %v401 = vpack.c.b16 %v375, %v373
        %v402 = vpack.c.b16 %v378, %v376
        %v403 = vpack.c.b16 %v379, %v377
        %v404 = vpack.c.b16 %v382, %v380
        %v405 = vpack.c.b16 %v383, %v381
        %v406 = vpack.c.b16 %v386, %v384
        %v407 = vpack.c.b16 %v387, %v385
        %v408 = vpack.c.b16 %v390, %v388
        %v409 = vpack.c.b16 %v391, %v389
        %v410 = vpack.c.b16 %v394, %v392
        %v411 = vpack.c.b16 %v395, %v393
        %428 = vmatpush.bf16.msra.mxu0 %v410
        %429 = vmatpush.bf16.msra.mxu0 %v408
        %430 = vmatpush.bf16.msra.mxu0 %v406
        %431 = vmatpush.bf16.msra.mxu0 %v404
        %432 = vmatpush.bf16.msra.mxu0 %v402
        %433 = vmatpush.bf16.msra.mxu0 %v400
        %434 = vmatpush.bf16.msra.mxu0 %v398
        %435 = vmatpush.bf16.msra.mxu0 %v396
        %436 = vmatmul.bf16.gmra.mxu0 %v310
        %v437 = vpop.f32.mrf.mxu0
        %v438 = vadd.f32 %v344, %v437
        %v439 = vpop.f32.mrf.mxu0
        %v440 = vadd.f32 %v344, %v439
        %441 = vmatmul.bf16.gmra.mxu0 %v311
        %v442 = vpop.f32.mrf.mxu0
        %v443 = vadd.f32 %v344, %v442
        %v444 = vpop.f32.mrf.mxu0
        %v445 = vadd.f32 %v344, %v444
        %446 = vmatmul.bf16.gmra.mxu0 %v312
        %v447 = vpop.f32.mrf.mxu0
        %v448 = vadd.f32 %v344, %v447
        %v449 = vpop.f32.mrf.mxu0
        %v450 = vadd.f32 %v344, %v449
        %451 = vmatmul.bf16.gmra.mxu0 %v313
        %v452 = vpop.f32.mrf.mxu0
        %v453 = vadd.f32 %v344, %v452
        %v454 = vpop.f32.mrf.mxu0
        %v455 = vadd.f32 %v344, %v454
        %456 = vmatmul.bf16.gmra.mxu0 %v314
        %v457 = vpop.f32.mrf.mxu0
        %v458 = vadd.f32 %v344, %v457
        %v459 = vpop.f32.mrf.mxu0
        %v460 = vadd.f32 %v344, %v459
        %461 = vmatmul.bf16.gmra.mxu0 %v315
        %v462 = vpop.f32.mrf.mxu0
        %v463 = vadd.f32 %v344, %v462
        %v464 = vpop.f32.mrf.mxu0
        %v465 = vadd.f32 %v344, %v464
        %466 = vmatmul.bf16.gmra.mxu0 %v316
        %v467 = vpop.f32.mrf.mxu0
        %v468 = vadd.f32 %v344, %v467
        %v469 = vpop.f32.mrf.mxu0
        %v470 = vadd.f32 %v344, %v469
        %471 = vmatmul.bf16.gmra.mxu0 %v317
        %v472 = vpop.f32.mrf.mxu0
        %v473 = vadd.f32 %v344, %v472
        %v474 = vpop.f32.mrf.mxu0
        %v475 = vadd.f32 %v344, %v474
        %476 = vmatmul.bf16.gmra.mxu0 %v318
        %v477 = vpop.f32.mrf.mxu0
        %v478 = vadd.f32 %v344, %v477
        %v479 = vpop.f32.mrf.mxu0
        %v480 = vadd.f32 %v344, %v479
        %481 = vmatmul.bf16.gmra.mxu0 %v319
        %v482 = vpop.f32.mrf.mxu0
        %v483 = vadd.f32 %v344, %v482
        %v484 = vpop.f32.mrf.mxu0
        %v485 = vadd.f32 %v344, %v484
        %486 = vmatmul.bf16.gmra.mxu0 %v320
        %v487 = vpop.f32.mrf.mxu0
        %v488 = vadd.f32 %v344, %v487
        %v489 = vpop.f32.mrf.mxu0
        %v490 = vadd.f32 %v344, %v489
        %491 = vmatmul.bf16.gmra.mxu0 %v321
        %v492 = vpop.f32.mrf.mxu0
        %v493 = vadd.f32 %v344, %v492
        %v494 = vpop.f32.mrf.mxu0
        %v495 = vadd.f32 %v344, %v494
        %496 = vmatmul.bf16.gmra.mxu0 %v322
        %v497 = vpop.f32.mrf.mxu0
        %v498 = vadd.f32 %v344, %v497
        %v499 = vpop.f32.mrf.mxu0
        %v500 = vadd.f32 %v344, %v499
        %501 = vmatmul.bf16.gmra.mxu0 %v323
        %v502 = vpop.f32.mrf.mxu0
        %v503 = vadd.f32 %v344, %v502
        %v504 = vpop.f32.mrf.mxu0
        %v505 = vadd.f32 %v344, %v504
        %506 = vmatmul.bf16.gmra.mxu0 %v324
        %v507 = vpop.f32.mrf.mxu0
        %v508 = vadd.f32 %v344, %v507
        %v509 = vpop.f32.mrf.mxu0
        %v510 = vadd.f32 %v344, %v509
        %511 = vmatmul.bf16.gmra.mxu0 %v325
        %v512 = vpop.f32.mrf.mxu0
        %v513 = vadd.f32 %v344, %v512
        %v514 = vpop.f32.mrf.mxu0
        %v515 = vadd.f32 %v344, %v514
        %516 = vdwg.mxu0
        %517 = vmatpush.bf16.msra.mxu0 %v411
        %518 = vmatpush.bf16.msra.mxu0 %v409
        %519 = vmatpush.bf16.msra.mxu0 %v407
        %520 = vmatpush.bf16.msra.mxu0 %v405
        %521 = vmatpush.bf16.msra.mxu0 %v403
        %522 = vmatpush.bf16.msra.mxu0 %v401
        %523 = vmatpush.bf16.msra.mxu0 %v399
        %524 = vmatpush.bf16.msra.mxu0 %v397
        %525 = vmatmul.bf16.gmra.mxu0 %v310
        %v526 = vpop.f32.mrf.mxu0
        %v527 = vadd.f32 %v345, %v526
        %v528 = vpop.f32.mrf.mxu0
        %v529 = vadd.f32 %v345, %v528
        %530 = vmatmul.bf16.gmra.mxu0 %v311
        %v531 = vpop.f32.mrf.mxu0
        %v532 = vadd.f32 %v345, %v531
        %v533 = vpop.f32.mrf.mxu0
        %v534 = vadd.f32 %v345, %v533
        %535 = vmatmul.bf16.gmra.mxu0 %v312
        %v536 = vpop.f32.mrf.mxu0
        %v537 = vadd.f32 %v345, %v536
        %v538 = vpop.f32.mrf.mxu0
        %v539 = vadd.f32 %v345, %v538
        %540 = vmatmul.bf16.gmra.mxu0 %v313
        %v541 = vpop.f32.mrf.mxu0
        %v542 = vadd.f32 %v345, %v541
        %v543 = vpop.f32.mrf.mxu0
        %v544 = vadd.f32 %v345, %v543
        %545 = vmatmul.bf16.gmra.mxu0 %v314
        %v546 = vpop.f32.mrf.mxu0
        %v547 = vadd.f32 %v345, %v546
        %v548 = vpop.f32.mrf.mxu0
        %v549 = vadd.f32 %v345, %v548
        %550 = vmatmul.bf16.gmra.mxu0 %v315
        %v551 = vpop.f32.mrf.mxu0
        %v552 = vadd.f32 %v345, %v551
        %v553 = vpop.f32.mrf.mxu0
        %v554 = vadd.f32 %v345, %v553
        %555 = vmatmul.bf16.gmra.mxu0 %v316
        %v556 = vpop.f32.mrf.mxu0
        %v557 = vadd.f32 %v345, %v556
        %v558 = vpop.f32.mrf.mxu0
        %v559 = vadd.f32 %v345, %v558
        %560 = vmatmul.bf16.gmra.mxu0 %v317
        %v561 = vpop.f32.mrf.mxu0
        %v562 = vadd.f32 %v345, %v561
        %v563 = vpop.f32.mrf.mxu0
        %v564 = vadd.f32 %v345, %v563
        %565 = vmatmul.bf16.gmra.mxu0 %v318
        %v566 = vpop.f32.mrf.mxu0
        %v567 = vadd.f32 %v345, %v566
        %v568 = vpop.f32.mrf.mxu0
        %v569 = vadd.f32 %v345, %v568
        %570 = vmatmul.bf16.gmra.mxu0 %v319
        %v571 = vpop.f32.mrf.mxu0
        %v572 = vadd.f32 %v345, %v571
        %v573 = vpop.f32.mrf.mxu0
        %v574 = vadd.f32 %v345, %v573
        %575 = vmatmul.bf16.gmra.mxu0 %v320
        %v576 = vpop.f32.mrf.mxu0
        %v577 = vadd.f32 %v345, %v576
        %v578 = vpop.f32.mrf.mxu0
        %v579 = vadd.f32 %v345, %v578
        %580 = vmatmul.bf16.gmra.mxu0 %v321
        %v581 = vpop.f32.mrf.mxu0
        %v582 = vadd.f32 %v345, %v581
        %v583 = vpop.f32.mrf.mxu0
        %v584 = vadd.f32 %v345, %v583
        %585 = vmatmul.bf16.gmra.mxu0 %v322
        %v586 = vpop.f32.mrf.mxu0
        %v587 = vadd.f32 %v345, %v586
        %v588 = vpop.f32.mrf.mxu0
        %v589 = vadd.f32 %v345, %v588
        %590 = vmatmul.bf16.gmra.mxu0 %v323
        %v591 = vpop.f32.mrf.mxu0
        %v592 = vadd.f32 %v345, %v591
        %v593 = vpop.f32.mrf.mxu0
        %v594 = vadd.f32 %v345, %v593
        %595 = vmatmul.bf16.gmra.mxu0 %v324
        %v596 = vpop.f32.mrf.mxu0
        %v597 = vadd.f32 %v345, %v596
        %v598 = vpop.f32.mrf.mxu0
        %v599 = vadd.f32 %v345, %v598
        %600 = vmatmul.bf16.gmra.mxu0 %v325
        %v601 = vpop.f32.mrf.mxu0
        %v602 = vadd.f32 %v345, %v601
        %v603 = vpop.f32.mrf.mxu0
        %v604 = vadd.f32 %v345, %v603
        %605 = vdwg.mxu0
        %v606 = vld [vmem:[%s3] sm:$0x1]
        %v607 = vld [vmem:[%s4] sm:$0x1]
        %608 = vadd.xlane.f32.xlu0 %v438
        %v609 = vpop.xlane.xlu0 %608
        %610 = vadd.xlane.f32.xlu0 %v440
        %v611 = vpop.xlane.xlu0 %610
        %612 = vadd.xlane.f32.xlu0 %v443
        %v613 = vpop.xlane.xlu0 %612
        %614 = vadd.xlane.f32.xlu0 %v445
        %v615 = vpop.xlane.xlu0 %614
        %616 = vadd.xlane.f32.xlu0 %v448
        %v617 = vpop.xlane.xlu0 %616
        %618 = vadd.xlane.f32.xlu0 %v450
        %v619 = vpop.xlane.xlu0 %618
        %620 = vadd.xlane.f32.xlu0 %v453
        %v621 = vpop.xlane.xlu0 %620
        %622 = vadd.xlane.f32.xlu0 %v455
        %v623 = vpop.xlane.xlu0 %622
        %624 = vadd.xlane.f32.xlu0 %v458
        %v625 = vpop.xlane.xlu0 %624
        %626 = vadd.xlane.f32.xlu0 %v460
        %v627 = vpop.xlane.xlu0 %626
        %628 = vadd.xlane.f32.xlu0 %v463
        %v629 = vpop.xlane.xlu0 %628
        %630 = vadd.xlane.f32.xlu0 %v465
        %v631 = vpop.xlane.xlu0 %630
        %632 = vadd.xlane.f32.xlu0 %v468
        %v633 = vpop.xlane.xlu0 %632
        %634 = vadd.xlane.f32.xlu0 %v470
        %v635 = vpop.xlane.xlu0 %634
        %636 = vadd.xlane.f32.xlu0 %v473
        %v637 = vpop.xlane.xlu0 %636
        %638 = vadd.xlane.f32.xlu0 %v475
        %v639 = vpop.xlane.xlu0 %638
        %640 = vadd.xlane.f32.xlu0 %v478
        %v641 = vpop.xlane.xlu0 %640
        %642 = vadd.xlane.f32.xlu0 %v480
        %v643 = vpop.xlane.xlu0 %642
        %644 = vadd.xlane.f32.xlu0 %v483
        %v645 = vpop.xlane.xlu0 %644
        %646 = vadd.xlane.f32.xlu0 %v485
        %v647 = vpop.xlane.xlu0 %646
        %648 = vadd.xlane.f32.xlu0 %v488
        %v649 = vpop.xlane.xlu0 %648
        %650 = vadd.xlane.f32.xlu0 %v490
        %v651 = vpop.xlane.xlu0 %650
        %652 = vadd.xlane.f32.xlu0 %v493
        %v653 = vpop.xlane.xlu0 %652
        %654 = vadd.xlane.f32.xlu0 %v495
        %v655 = vpop.xlane.xlu0 %654
        %656 = vadd.xlane.f32.xlu0 %v498
        %v657 = vpop.xlane.xlu0 %656
        %658 = vadd.xlane.f32.xlu0 %v500
        %v659 = vpop.xlane.xlu0 %658
        %660 = vadd.xlane.f32.xlu0 %v503
        %v661 = vpop.xlane.xlu0 %660
        %662 = vadd.xlane.f32.xlu0 %v505
        %v663 = vpop.xlane.xlu0 %662
        %664 = vadd.xlane.f32.xlu0 %v508
        %v665 = vpop.xlane.xlu0 %664
        %666 = vadd.xlane.f32.xlu0 %v510
        %v667 = vpop.xlane.xlu0 %666
        %668 = vadd.xlane.f32.xlu0 %v513
        %v669 = vpop.xlane.xlu0 %668
        %670 = vadd.xlane.f32.xlu0 %v515
        %v671 = vpop.xlane.xlu0 %670
        %v672 = vmul.f32 %v438, %v438
        %v673 = vmul.f32 %v440, %v440
        %v674 = vmul.f32 %v443, %v443
        %v675 = vmul.f32 %v445, %v445
        %v676 = vmul.f32 %v448, %v448
        %v677 = vmul.f32 %v450, %v450
        %v678 = vmul.f32 %v453, %v453
        %v679 = vmul.f32 %v455, %v455
        %v680 = vmul.f32 %v458, %v458
        %v681 = vmul.f32 %v460, %v460
        %v682 = vmul.f32 %v463, %v463
        %v683 = vmul.f32 %v465, %v465
        %v684 = vmul.f32 %v468, %v468
        %v685 = vmul.f32 %v470, %v470
        %v686 = vmul.f32 %v473, %v473
        %v687 = vmul.f32 %v475, %v475
        %v688 = vmul.f32 %v478, %v478
        %v689 = vmul.f32 %v480, %v480
        %v690 = vmul.f32 %v483, %v483
        %v691 = vmul.f32 %v485, %v485
        %v692 = vmul.f32 %v488, %v488
        %v693 = vmul.f32 %v490, %v490
        %v694 = vmul.f32 %v493, %v493
        %v695 = vmul.f32 %v495, %v495
        %v696 = vmul.f32 %v498, %v498
        %v697 = vmul.f32 %v500, %v500
        %v698 = vmul.f32 %v503, %v503
        %v699 = vmul.f32 %v505, %v505
        %v700 = vmul.f32 %v508, %v508
        %v701 = vmul.f32 %v510, %v510
        %v702 = vmul.f32 %v513, %v513
        %v703 = vmul.f32 %v515, %v515
        %704 = vadd.xlane.f32.xlu0 %v672
        %v705 = vpop.xlane.xlu0 %704
        %706 = vadd.xlane.f32.xlu0 %v673
        %v707 = vpop.xlane.xlu0 %706
        %708 = vadd.xlane.f32.xlu0 %v674
        %v709 = vpop.xlane.xlu0 %708
        %710 = vadd.xlane.f32.xlu0 %v675
        %v711 = vpop.xlane.xlu0 %710
        %712 = vadd.xlane.f32.xlu0 %v676
        %v713 = vpop.xlane.xlu0 %712
        %714 = vadd.xlane.f32.xlu0 %v677
        %v715 = vpop.xlane.xlu0 %714
        %716 = vadd.xlane.f32.xlu0 %v678
        %v717 = vpop.xlane.xlu0 %716
        %718 = vadd.xlane.f32.xlu0 %v679
        %v719 = vpop.xlane.xlu0 %718
        %720 = vadd.xlane.f32.xlu0 %v680
        %v721 = vpop.xlane.xlu0 %720
        %722 = vadd.xlane.f32.xlu0 %v681
        %v723 = vpop.xlane.xlu0 %722
        %724 = vadd.xlane.f32.xlu0 %v682
        %v725 = vpop.xlane.xlu0 %724
        %726 = vadd.xlane.f32.xlu0 %v683
        %v727 = vpop.xlane.xlu0 %726
        %728 = vadd.xlane.f32.xlu0 %v684
        %v729 = vpop.xlane.xlu0 %728
        %730 = vadd.xlane.f32.xlu0 %v685
        %v731 = vpop.xlane.xlu0 %730
        %732 = vadd.xlane.f32.xlu0 %v686
        %v733 = vpop.xlane.xlu0 %732
        %734 = vadd.xlane.f32.xlu0 %v687
        %v735 = vpop.xlane.xlu0 %734
        %736 = vadd.xlane.f32.xlu0 %v688
        %v737 = vpop.xlane.xlu0 %736
        %738 = vadd.xlane.f32.xlu0 %v689
        %v739 = vpop.xlane.xlu0 %738
        %740 = vadd.xlane.f32.xlu0 %v690
        %v741 = vpop.xlane.xlu0 %740
        %742 = vadd.xlane.f32.xlu0 %v691
        %v743 = vpop.xlane.xlu0 %742
        %744 = vadd.xlane.f32.xlu0 %v692
        %v745 = vpop.xlane.xlu0 %744
        %746 = vadd.xlane.f32.xlu0 %v693
        %v747 = vpop.xlane.xlu0 %746
        %748 = vadd.xlane.f32.xlu0 %v694
        %v749 = vpop.xlane.xlu0 %748
        %750 = vadd.xlane.f32.xlu0 %v695
        %v751 = vpop.xlane.xlu0 %750
        %752 = vadd.xlane.f32.xlu0 %v696
        %v753 = vpop.xlane.xlu0 %752
        %754 = vadd.xlane.f32.xlu0 %v697
        %v755 = vpop.xlane.xlu0 %754
        %756 = vadd.xlane.f32.xlu0 %v698
        %v757 = vpop.xlane.xlu0 %756
        %758 = vadd.xlane.f32.xlu0 %v699
        %v759 = vpop.xlane.xlu0 %758
        %760 = vadd.xlane.f32.xlu0 %v700
        %v761 = vpop.xlane.xlu0 %760
        %762 = vadd.xlane.f32.xlu0 %v701
        %v763 = vpop.xlane.xlu0 %762
        %764 = vadd.xlane.f32.xlu0 %v702
        %v765 = vpop.xlane.xlu0 %764
        %766 = vadd.xlane.f32.xlu0 %v703
        %v767 = vpop.xlane.xlu0 %766
        %v768 = vmul.f32 %v609, 0.010416667
        %v769 = vmul.f32 %v611, 0.010416667
        %v770 = vmul.f32 %v613, 0.010416667
        %v771 = vmul.f32 %v615, 0.010416667
        %v772 = vmul.f32 %v617, 0.010416667
        %v773 = vmul.f32 %v619, 0.010416667
        %v774 = vmul.f32 %v621, 0.010416667
        %v775 = vmul.f32 %v623, 0.010416667
        %v776 = vmul.f32 %v625, 0.010416667
        %v777 = vmul.f32 %v627, 0.010416667
        %v778 = vmul.f32 %v629, 0.010416667
        %v779 = vmul.f32 %v631, 0.010416667
        %v780 = vmul.f32 %v633, 0.010416667
        %v781 = vmul.f32 %v635, 0.010416667
        %v782 = vmul.f32 %v637, 0.010416667
        %v783 = vmul.f32 %v639, 0.010416667
        %v784 = vmul.f32 %v641, 0.010416667
        %v785 = vmul.f32 %v643, 0.010416667
        %v786 = vmul.f32 %v645, 0.010416667
        %v787 = vmul.f32 %v647, 0.010416667
        %v788 = vmul.f32 %v649, 0.010416667
        %v789 = vmul.f32 %v651, 0.010416667
        %v790 = vmul.f32 %v653, 0.010416667
        %v791 = vmul.f32 %v655, 0.010416667
        %v792 = vmul.f32 %v657, 0.010416667
        %v793 = vmul.f32 %v659, 0.010416667
        %v794 = vmul.f32 %v661, 0.010416667
        %v795 = vmul.f32 %v663, 0.010416667
        %v796 = vmul.f32 %v665, 0.010416667
        %v797 = vmul.f32 %v667, 0.010416667
        %v798 = vmul.f32 %v669, 0.010416667
        %v799 = vmul.f32 %v671, 0.010416667
        %v800 = vmul.f32 %v705, 0.010416667
        %v801 = vmul.f32 %v707, 0.010416667
        %v802 = vmul.f32 %v709, 0.010416667
        %v803 = vmul.f32 %v711, 0.010416667
        %v804 = vmul.f32 %v713, 0.010416667
        %v805 = vmul.f32 %v715, 0.010416667
        %v806 = vmul.f32 %v717, 0.010416667
        %v807 = vmul.f32 %v719, 0.010416667
        %v808 = vmul.f32 %v721, 0.010416667
        %v809 = vmul.f32 %v723, 0.010416667
        %v810 = vmul.f32 %v725, 0.010416667
        %v811 = vmul.f32 %v727, 0.010416667
        %v812 = vmul.f32 %v729, 0.010416667
        %v813 = vmul.f32 %v731, 0.010416667
        %v814 = vmul.f32 %v733, 0.010416667
        %v815 = vmul.f32 %v735, 0.010416667
        %v816 = vmul.f32 %v737, 0.010416667
        %v817 = vmul.f32 %v739, 0.010416667
        %v818 = vmul.f32 %v741, 0.010416667
        %v819 = vmul.f32 %v743, 0.010416667
        %v820 = vmul.f32 %v745, 0.010416667
        %v821 = vmul.f32 %v747, 0.010416667
        %v822 = vmul.f32 %v749, 0.010416667
        %v823 = vmul.f32 %v751, 0.010416667
        %v824 = vmul.f32 %v753, 0.010416667
        %v825 = vmul.f32 %v755, 0.010416667
        %v826 = vmul.f32 %v757, 0.010416667
        %v827 = vmul.f32 %v759, 0.010416667
        %v828 = vmul.f32 %v761, 0.010416667
        %v829 = vmul.f32 %v763, 0.010416667
        %v830 = vmul.f32 %v765, 0.010416667
        %v831 = vmul.f32 %v767, 0.010416667
        %v832 = vmul.f32 %v768, %v768
        %v833 = vmul.f32 %v769, %v769
        %v834 = vmul.f32 %v770, %v770
        %v835 = vmul.f32 %v771, %v771
        %v836 = vmul.f32 %v772, %v772
        %v837 = vmul.f32 %v773, %v773
        %v838 = vmul.f32 %v774, %v774
        %v839 = vmul.f32 %v775, %v775
        %v840 = vmul.f32 %v776, %v776
        %v841 = vmul.f32 %v777, %v777
        %v842 = vmul.f32 %v778, %v778
        %v843 = vmul.f32 %v779, %v779
        %v844 = vmul.f32 %v780, %v780
        %v845 = vmul.f32 %v781, %v781
        %v846 = vmul.f32 %v782, %v782
        %v847 = vmul.f32 %v783, %v783
        %v848 = vmul.f32 %v784, %v784
        %v849 = vmul.f32 %v785, %v785
        %v850 = vmul.f32 %v786, %v786
        %v851 = vmul.f32 %v787, %v787
        %v852 = vmul.f32 %v788, %v788
        %v853 = vmul.f32 %v789, %v789
        %v854 = vmul.f32 %v790, %v790
        %v855 = vmul.f32 %v791, %v791
        %v856 = vmul.f32 %v792, %v792
        %v857 = vmul.f32 %v793, %v793
        %v858 = vmul.f32 %v794, %v794
        %v859 = vmul.f32 %v795, %v795
        %v860 = vmul.f32 %v796, %v796
        %v861 = vmul.f32 %v797, %v797
        %v862 = vmul.f32 %v798, %v798
        %v863 = vmul.f32 %v799, %v799
        %v864 = vsub.f32 %v800, %v832
        %v865 = vsub.f32 %v801, %v833
        %v866 = vsub.f32 %v802, %v834
        %v867 = vsub.f32 %v803, %v835
        %v868 = vsub.f32 %v804, %v836
        %v869 = vsub.f32 %v805, %v837
        %v870 = vsub.f32 %v806, %v838
        %v871 = vsub.f32 %v807, %v839
        %v872 = vsub.f32 %v808, %v840
        %v873 = vsub.f32 %v809, %v841
        %v874 = vsub.f32 %v810, %v842
        %v875 = vsub.f32 %v811, %v843
        %v876 = vsub.f32 %v812, %v844
        %v877 = vsub.f32 %v813, %v845
        %v878 = vsub.f32 %v814, %v846
        %v879 = vsub.f32 %v815, %v847
        %v880 = vsub.f32 %v816, %v848
        %v881 = vsub.f32 %v817, %v849
        %v882 = vsub.f32 %v818, %v850
        %v883 = vsub.f32 %v819, %v851
        %v884 = vsub.f32 %v820, %v852
        %v885 = vsub.f32 %v821, %v853
        %v886 = vsub.f32 %v822, %v854
        %v887 = vsub.f32 %v823, %v855
        %v888 = vsub.f32 %v824, %v856
        %v889 = vsub.f32 %v825, %v857
        %v890 = vsub.f32 %v826, %v858
        %v891 = vsub.f32 %v827, %v859
        %v892 = vsub.f32 %v828, %v860
        %v893 = vsub.f32 %v829, %v861
        %v894 = vsub.f32 %v830, %v862
        %v895 = vsub.f32 %v831, %v863
        %v896 = vmax.f32 %v864, 0.0
        %v897 = vmax.f32 %v865, 0.0
        %v898 = vmax.f32 %v866, 0.0
        %v899 = vmax.f32 %v867, 0.0
        %v900 = vmax.f32 %v868, 0.0
        %v901 = vmax.f32 %v869, 0.0
        %v902 = vmax.f32 %v870, 0.0
        %v903 = vmax.f32 %v871, 0.0
        %v904 = vmax.f32 %v872, 0.0
        %v905 = vmax.f32 %v873, 0.0
        %v906 = vmax.f32 %v874, 0.0
        %v907 = vmax.f32 %v875, 0.0
        %v908 = vmax.f32 %v876, 0.0
        %v909 = vmax.f32 %v877, 0.0
        %v910 = vmax.f32 %v878, 0.0
        %v911 = vmax.f32 %v879, 0.0
        %v912 = vmax.f32 %v880, 0.0
        %v913 = vmax.f32 %v881, 0.0
        %v914 = vmax.f32 %v882, 0.0
        %v915 = vmax.f32 %v883, 0.0
        %v916 = vmax.f32 %v884, 0.0
        %v917 = vmax.f32 %v885, 0.0
        %v918 = vmax.f32 %v886, 0.0
        %v919 = vmax.f32 %v887, 0.0
        %v920 = vmax.f32 %v888, 0.0
        %v921 = vmax.f32 %v889, 0.0
        %v922 = vmax.f32 %v890, 0.0
        %v923 = vmax.f32 %v891, 0.0
        %v924 = vmax.f32 %v892, 0.0
        %v925 = vmax.f32 %v893, 0.0
        %v926 = vmax.f32 %v894, 0.0
        %v927 = vmax.f32 %v895, 0.0
        %v928 = vsub.f32 %v438, %v768
        %v929 = vsub.f32 %v440, %v769
        %v930 = vsub.f32 %v443, %v770
        %v931 = vsub.f32 %v445, %v771
        %v932 = vsub.f32 %v448, %v772
        %v933 = vsub.f32 %v450, %v773
        %v934 = vsub.f32 %v453, %v774
        %v935 = vsub.f32 %v455, %v775
        %v936 = vsub.f32 %v458, %v776
        %v937 = vsub.f32 %v460, %v777
        %v938 = vsub.f32 %v463, %v778
        %v939 = vsub.f32 %v465, %v779
        %v940 = vsub.f32 %v468, %v780
        %v941 = vsub.f32 %v470, %v781
        %v942 = vsub.f32 %v473, %v782
        %v943 = vsub.f32 %v475, %v783
        %v944 = vsub.f32 %v478, %v784
        %v945 = vsub.f32 %v480, %v785
        %v946 = vsub.f32 %v483, %v786
        %v947 = vsub.f32 %v485, %v787
        %v948 = vsub.f32 %v488, %v788
        %v949 = vsub.f32 %v490, %v789
        %v950 = vsub.f32 %v493, %v790
        %v951 = vsub.f32 %v495, %v791
        %v952 = vsub.f32 %v498, %v792
        %v953 = vsub.f32 %v500, %v793
        %v954 = vsub.f32 %v503, %v794
        %v955 = vsub.f32 %v505, %v795
        %v956 = vsub.f32 %v508, %v796
        %v957 = vsub.f32 %v510, %v797
        %v958 = vsub.f32 %v513, %v798
        %v959 = vsub.f32 %v515, %v799
        %v960 = vadd.f32 %v896, 1e-05
        %v961 = vadd.f32 %v897, 1e-05
        %v962 = vadd.f32 %v898, 1e-05
        %v963 = vadd.f32 %v899, 1e-05
        %v964 = vadd.f32 %v900, 1e-05
        %v965 = vadd.f32 %v901, 1e-05
        %v966 = vadd.f32 %v902, 1e-05
        %v967 = vadd.f32 %v903, 1e-05
        %v968 = vadd.f32 %v904, 1e-05
        %v969 = vadd.f32 %v905, 1e-05
        %v970 = vadd.f32 %v906, 1e-05
        %v971 = vadd.f32 %v907, 1e-05
        %v972 = vadd.f32 %v908, 1e-05
        %v973 = vadd.f32 %v909, 1e-05
        %v974 = vadd.f32 %v910, 1e-05
        %v975 = vadd.f32 %v911, 1e-05
        %v976 = vadd.f32 %v912, 1e-05
        %v977 = vadd.f32 %v913, 1e-05
        %v978 = vadd.f32 %v914, 1e-05
        %v979 = vadd.f32 %v915, 1e-05
        %v980 = vadd.f32 %v916, 1e-05
        %v981 = vadd.f32 %v917, 1e-05
        %v982 = vadd.f32 %v918, 1e-05
        %v983 = vadd.f32 %v919, 1e-05
        %v984 = vadd.f32 %v920, 1e-05
        %v985 = vadd.f32 %v921, 1e-05
        %v986 = vadd.f32 %v922, 1e-05
        %v987 = vadd.f32 %v923, 1e-05
        %v988 = vadd.f32 %v924, 1e-05
        %v989 = vadd.f32 %v925, 1e-05
        %v990 = vadd.f32 %v926, 1e-05
        %v991 = vadd.f32 %v927, 1e-05
        %v992 = vrsqrt.pop %v960
        %v993 = vmul.f32 %v992, %v960
        %v994 = vmul.f32 %v993, %v992
        %v995 = vmul.f32 0.5, %v994
        %v996 = vsub.f32 1.5, %v995
        %v997 = vmul.f32 %v992, %v996
        %vm998 = vweird.f32 %v960
        %vm999 = vweird.f32 %v992
        %vm1000 = vmor %vm998, %vm999
        %v1001 = vsel %vm1000, %v992, %v997
        %v1002 = vrsqrt.pop %v961
        %v1003 = vmul.f32 %v1002, %v961
        %v1004 = vmul.f32 %v1003, %v1002
        %v1005 = vmul.f32 0.5, %v1004
        %v1006 = vsub.f32 1.5, %v1005
        %v1007 = vmul.f32 %v1002, %v1006
        %vm1008 = vweird.f32 %v961
        %vm1009 = vweird.f32 %v1002
        %vm1010 = vmor %vm1008, %vm1009
        %v1011 = vsel %vm1010, %v1002, %v1007
        %v1012 = vrsqrt.pop %v962
        %v1013 = vmul.f32 %v1012, %v962
        %v1014 = vmul.f32 %v1013, %v1012
        %v1015 = vmul.f32 0.5, %v1014
        %v1016 = vsub.f32 1.5, %v1015
        %v1017 = vmul.f32 %v1012, %v1016
        %vm1018 = vweird.f32 %v962
        %vm1019 = vweird.f32 %v1012
        %vm1020 = vmor %vm1018, %vm1019
        %v1021 = vsel %vm1020, %v1012, %v1017
        %v1022 = vrsqrt.pop %v963
        %v1023 = vmul.f32 %v1022, %v963
        %v1024 = vmul.f32 %v1023, %v1022
        %v1025 = vmul.f32 0.5, %v1024
        %v1026 = vsub.f32 1.5, %v1025
        %v1027 = vmul.f32 %v1022, %v1026
        %vm1028 = vweird.f32 %v963
        %vm1029 = vweird.f32 %v1022
        %vm1030 = vmor %vm1028, %vm1029
        %v1031 = vsel %vm1030, %v1022, %v1027
        %v1032 = vrsqrt.pop %v964
        %v1033 = vmul.f32 %v1032, %v964
        %v1034 = vmul.f32 %v1033, %v1032
        %v1035 = vmul.f32 0.5, %v1034
        %v1036 = vsub.f32 1.5, %v1035
        %v1037 = vmul.f32 %v1032, %v1036
        %vm1038 = vweird.f32 %v964
        %vm1039 = vweird.f32 %v1032
        %vm1040 = vmor %vm1038, %vm1039
        %v1041 = vsel %vm1040, %v1032, %v1037
        %v1042 = vrsqrt.pop %v965
        %v1043 = vmul.f32 %v1042, %v965
        %v1044 = vmul.f32 %v1043, %v1042
        %v1045 = vmul.f32 0.5, %v1044
        %v1046 = vsub.f32 1.5, %v1045
        %v1047 = vmul.f32 %v1042, %v1046
        %vm1048 = vweird.f32 %v965
        %vm1049 = vweird.f32 %v1042
        %vm1050 = vmor %vm1048, %vm1049
        %v1051 = vsel %vm1050, %v1042, %v1047
        %v1052 = vrsqrt.pop %v966
        %v1053 = vmul.f32 %v1052, %v966
        %v1054 = vmul.f32 %v1053, %v1052
        %v1055 = vmul.f32 0.5, %v1054
        %v1056 = vsub.f32 1.5, %v1055
        %v1057 = vmul.f32 %v1052, %v1056
        %vm1058 = vweird.f32 %v966
        %vm1059 = vweird.f32 %v1052
        %vm1060 = vmor %vm1058, %vm1059
        %v1061 = vsel %vm1060, %v1052, %v1057
        %v1062 = vrsqrt.pop %v967
        %v1063 = vmul.f32 %v1062, %v967
        %v1064 = vmul.f32 %v1063, %v1062
        %v1065 = vmul.f32 0.5, %v1064
        %v1066 = vsub.f32 1.5, %v1065
        %v1067 = vmul.f32 %v1062, %v1066
        %vm1068 = vweird.f32 %v967
        %vm1069 = vweird.f32 %v1062
        %vm1070 = vmor %vm1068, %vm1069
        %v1071 = vsel %vm1070, %v1062, %v1067
        %v1072 = vrsqrt.pop %v968
        %v1073 = vmul.f32 %v1072, %v968
        %v1074 = vmul.f32 %v1073, %v1072
        %v1075 = vmul.f32 0.5, %v1074
        %v1076 = vsub.f32 1.5, %v1075
        %v1077 = vmul.f32 %v1072, %v1076
        %vm1078 = vweird.f32 %v968
        %vm1079 = vweird.f32 %v1072
        %vm1080 = vmor %vm1078, %vm1079
        %v1081 = vsel %vm1080, %v1072, %v1077
        %v1082 = vrsqrt.pop %v969
        %v1083 = vmul.f32 %v1082, %v969
        %v1084 = vmul.f32 %v1083, %v1082
        %v1085 = vmul.f32 0.5, %v1084
        %v1086 = vsub.f32 1.5, %v1085
        %v1087 = vmul.f32 %v1082, %v1086
        %vm1088 = vweird.f32 %v969
        %vm1089 = vweird.f32 %v1082
        %vm1090 = vmor %vm1088, %vm1089
        %v1091 = vsel %vm1090, %v1082, %v1087
        %v1092 = vrsqrt.pop %v970
        %v1093 = vmul.f32 %v1092, %v970
        %v1094 = vmul.f32 %v1093, %v1092
        %v1095 = vmul.f32 0.5, %v1094
        %v1096 = vsub.f32 1.5, %v1095
        %v1097 = vmul.f32 %v1092, %v1096
        %vm1098 = vweird.f32 %v970
        %vm1099 = vweird.f32 %v1092
        %vm1100 = vmor %vm1098, %vm1099
        %v1101 = vsel %vm1100, %v1092, %v1097
        %v1102 = vrsqrt.pop %v971
        %v1103 = vmul.f32 %v1102, %v971
        %v1104 = vmul.f32 %v1103, %v1102
        %v1105 = vmul.f32 0.5, %v1104
        %v1106 = vsub.f32 1.5, %v1105
        %v1107 = vmul.f32 %v1102, %v1106
        %vm1108 = vweird.f32 %v971
        %vm1109 = vweird.f32 %v1102
        %vm1110 = vmor %vm1108, %vm1109
        %v1111 = vsel %vm1110, %v1102, %v1107
        %v1112 = vrsqrt.pop %v972
        %v1113 = vmul.f32 %v1112, %v972
        %v1114 = vmul.f32 %v1113, %v1112
        %v1115 = vmul.f32 0.5, %v1114
        %v1116 = vsub.f32 1.5, %v1115
        %v1117 = vmul.f32 %v1112, %v1116
        %vm1118 = vweird.f32 %v972
        %vm1119 = vweird.f32 %v1112
        %vm1120 = vmor %vm1118, %vm1119
        %v1121 = vsel %vm1120, %v1112, %v1117
        %v1122 = vrsqrt.pop %v973
        %v1123 = vmul.f32 %v1122, %v973
        %v1124 = vmul.f32 %v1123, %v1122
        %v1125 = vmul.f32 0.5, %v1124
        %v1126 = vsub.f32 1.5, %v1125
        %v1127 = vmul.f32 %v1122, %v1126
        %vm1128 = vweird.f32 %v973
        %vm1129 = vweird.f32 %v1122
        %vm1130 = vmor %vm1128, %vm1129
        %v1131 = vsel %vm1130, %v1122, %v1127
        %v1132 = vrsqrt.pop %v974
        %v1133 = vmul.f32 %v1132, %v974
        %v1134 = vmul.f32 %v1133, %v1132
        %v1135 = vmul.f32 0.5, %v1134
        %v1136 = vsub.f32 1.5, %v1135
        %v1137 = vmul.f32 %v1132, %v1136
        %vm1138 = vweird.f32 %v974
        %vm1139 = vweird.f32 %v1132
        %vm1140 = vmor %vm1138, %vm1139
        %v1141 = vsel %vm1140, %v1132, %v1137
        %v1142 = vrsqrt.pop %v975
        %v1143 = vmul.f32 %v1142, %v975
        %v1144 = vmul.f32 %v1143, %v1142
        %v1145 = vmul.f32 0.5, %v1144
        %v1146 = vsub.f32 1.5, %v1145
        %v1147 = vmul.f32 %v1142, %v1146
        %vm1148 = vweird.f32 %v975
        %vm1149 = vweird.f32 %v1142
        %vm1150 = vmor %vm1148, %vm1149
        %v1151 = vsel %vm1150, %v1142, %v1147
        %v1152 = vrsqrt.pop %v976
        %v1153 = vmul.f32 %v1152, %v976
        %v1154 = vmul.f32 %v1153, %v1152
        %v1155 = vmul.f32 0.5, %v1154
        %v1156 = vsub.f32 1.5, %v1155
        %v1157 = vmul.f32 %v1152, %v1156
        %vm1158 = vweird.f32 %v976
        %vm1159 = vweird.f32 %v1152
        %vm1160 = vmor %vm1158, %vm1159
        %v1161 = vsel %vm1160, %v1152, %v1157
        %v1162 = vrsqrt.pop %v977
        %v1163 = vmul.f32 %v1162, %v977
        %v1164 = vmul.f32 %v1163, %v1162
        %v1165 = vmul.f32 0.5, %v1164
        %v1166 = vsub.f32 1.5, %v1165
        %v1167 = vmul.f32 %v1162, %v1166
        %vm1168 = vweird.f32 %v977
        %vm1169 = vweird.f32 %v1162
        %vm1170 = vmor %vm1168, %vm1169
        %v1171 = vsel %vm1170, %v1162, %v1167
        %v1172 = vrsqrt.pop %v978
        %v1173 = vmul.f32 %v1172, %v978
        %v1174 = vmul.f32 %v1173, %v1172
        %v1175 = vmul.f32 0.5, %v1174
        %v1176 = vsub.f32 1.5, %v1175
        %v1177 = vmul.f32 %v1172, %v1176
        %vm1178 = vweird.f32 %v978
        %vm1179 = vweird.f32 %v1172
        %vm1180 = vmor %vm1178, %vm1179
        %v1181 = vsel %vm1180, %v1172, %v1177
        %v1182 = vrsqrt.pop %v979
        %v1183 = vmul.f32 %v1182, %v979
        %v1184 = vmul.f32 %v1183, %v1182
        %v1185 = vmul.f32 0.5, %v1184
        %v1186 = vsub.f32 1.5, %v1185
        %v1187 = vmul.f32 %v1182, %v1186
        %vm1188 = vweird.f32 %v979
        %vm1189 = vweird.f32 %v1182
        %vm1190 = vmor %vm1188, %vm1189
        %v1191 = vsel %vm1190, %v1182, %v1187
        %v1192 = vrsqrt.pop %v980
        %v1193 = vmul.f32 %v1192, %v980
        %v1194 = vmul.f32 %v1193, %v1192
        %v1195 = vmul.f32 0.5, %v1194
        %v1196 = vsub.f32 1.5, %v1195
        %v1197 = vmul.f32 %v1192, %v1196
        %vm1198 = vweird.f32 %v980
        %vm1199 = vweird.f32 %v1192
        %vm1200 = vmor %vm1198, %vm1199
        %v1201 = vsel %vm1200, %v1192, %v1197
        %v1202 = vrsqrt.pop %v981
        %v1203 = vmul.f32 %v1202, %v981
        %v1204 = vmul.f32 %v1203, %v1202
        %v1205 = vmul.f32 0.5, %v1204
        %v1206 = vsub.f32 1.5, %v1205
        %v1207 = vmul.f32 %v1202, %v1206
        %vm1208 = vweird.f32 %v981
        %vm1209 = vweird.f32 %v1202
        %vm1210 = vmor %vm1208, %vm1209
        %v1211 = vsel %vm1210, %v1202, %v1207
        %v1212 = vrsqrt.pop %v982
        %v1213 = vmul.f32 %v1212, %v982
        %v1214 = vmul.f32 %v1213, %v1212
        %v1215 = vmul.f32 0.5, %v1214
        %v1216 = vsub.f32 1.5, %v1215
        %v1217 = vmul.f32 %v1212, %v1216
        %vm1218 = vweird.f32 %v982
        %vm1219 = vweird.f32 %v1212
        %vm1220 = vmor %vm1218, %vm1219
        %v1221 = vsel %vm1220, %v1212, %v1217
        %v1222 = vrsqrt.pop %v983
        %v1223 = vmul.f32 %v1222, %v983
        %v1224 = vmul.f32 %v1223, %v1222
        %v1225 = vmul.f32 0.5, %v1224
        %v1226 = vsub.f32 1.5, %v1225
        %v1227 = vmul.f32 %v1222, %v1226
        %vm1228 = vweird.f32 %v983
        %vm1229 = vweird.f32 %v1222
        %vm1230 = vmor %vm1228, %vm1229
        %v1231 = vsel %vm1230, %v1222, %v1227
        %v1232 = vrsqrt.pop %v984
        %v1233 = vmul.f32 %v1232, %v984
        %v1234 = vmul.f32 %v1233, %v1232
        %v1235 = vmul.f32 0.5, %v1234
        %v1236 = vsub.f32 1.5, %v1235
        %v1237 = vmul.f32 %v1232, %v1236
        %vm1238 = vweird.f32 %v984
        %vm1239 = vweird.f32 %v1232
        %vm1240 = vmor %vm1238, %vm1239
        %v1241 = vsel %vm1240, %v1232, %v1237
        %v1242 = vrsqrt.pop %v985
        %v1243 = vmul.f32 %v1242, %v985
        %v1244 = vmul.f32 %v1243, %v1242
        %v1245 = vmul.f32 0.5, %v1244
        %v1246 = vsub.f32 1.5, %v1245
        %v1247 = vmul.f32 %v1242, %v1246
        %vm1248 = vweird.f32 %v985
        %vm1249 = vweird.f32 %v1242
        %vm1250 = vmor %vm1248, %vm1249
        %v1251 = vsel %vm1250, %v1242, %v1247
        %v1252 = vrsqrt.pop %v986
        %v1253 = vmul.f32 %v1252, %v986
        %v1254 = vmul.f32 %v1253, %v1252
        %v1255 = vmul.f32 0.5, %v1254
        %v1256 = vsub.f32 1.5, %v1255
        %v1257 = vmul.f32 %v1252, %v1256
        %vm1258 = vweird.f32 %v986
        %vm1259 = vweird.f32 %v1252
        %vm1260 = vmor %vm1258, %vm1259
        %v1261 = vsel %vm1260, %v1252, %v1257
        %v1262 = vrsqrt.pop %v987
        %v1263 = vmul.f32 %v1262, %v987
        %v1264 = vmul.f32 %v1263, %v1262
        %v1265 = vmul.f32 0.5, %v1264
        %v1266 = vsub.f32 1.5, %v1265
        %v1267 = vmul.f32 %v1262, %v1266
        %vm1268 = vweird.f32 %v987
        %vm1269 = vweird.f32 %v1262
        %vm1270 = vmor %vm1268, %vm1269
        %v1271 = vsel %vm1270, %v1262, %v1267
        %v1272 = vrsqrt.pop %v988
        %v1273 = vmul.f32 %v1272, %v988
        %v1274 = vmul.f32 %v1273, %v1272
        %v1275 = vmul.f32 0.5, %v1274
        %v1276 = vsub.f32 1.5, %v1275
        %v1277 = vmul.f32 %v1272, %v1276
        %vm1278 = vweird.f32 %v988
        %vm1279 = vweird.f32 %v1272
        %vm1280 = vmor %vm1278, %vm1279
        %v1281 = vsel %vm1280, %v1272, %v1277
        %v1282 = vrsqrt.pop %v989
        %v1283 = vmul.f32 %v1282, %v989
        %v1284 = vmul.f32 %v1283, %v1282
        %v1285 = vmul.f32 0.5, %v1284
        %v1286 = vsub.f32 1.5, %v1285
        %v1287 = vmul.f32 %v1282, %v1286
        %vm1288 = vweird.f32 %v989
        %vm1289 = vweird.f32 %v1282
        %vm1290 = vmor %vm1288, %vm1289
        %v1291 = vsel %vm1290, %v1282, %v1287
        %v1292 = vrsqrt.pop %v990
        %v1293 = vmul.f32 %v1292, %v990
        %v1294 = vmul.f32 %v1293, %v1292
        %v1295 = vmul.f32 0.5, %v1294
        %v1296 = vsub.f32 1.5, %v1295
        %v1297 = vmul.f32 %v1292, %v1296
        %vm1298 = vweird.f32 %v990
        %vm1299 = vweird.f32 %v1292
        %vm1300 = vmor %vm1298, %vm1299
        %v1301 = vsel %vm1300, %v1292, %v1297
        %v1302 = vrsqrt.pop %v991
        %v1303 = vmul.f32 %v1302, %v991
        %v1304 = vmul.f32 %v1303, %v1302
        %v1305 = vmul.f32 0.5, %v1304
        %v1306 = vsub.f32 1.5, %v1305
        %v1307 = vmul.f32 %v1302, %v1306
        %vm1308 = vweird.f32 %v991
        %vm1309 = vweird.f32 %v1302
        %vm1310 = vmor %vm1308, %vm1309
        %v1311 = vsel %vm1310, %v1302, %v1307
        %v1312 = vmul.f32 %v928, %v1001
        %v1313 = vmul.f32 %v929, %v1011
        %v1314 = vmul.f32 %v930, %v1021
        %v1315 = vmul.f32 %v931, %v1031
        %v1316 = vmul.f32 %v932, %v1041
        %v1317 = vmul.f32 %v933, %v1051
        %v1318 = vmul.f32 %v934, %v1061
        %v1319 = vmul.f32 %v935, %v1071
        %v1320 = vmul.f32 %v936, %v1081
        %v1321 = vmul.f32 %v937, %v1091
        %v1322 = vmul.f32 %v938, %v1101
        %v1323 = vmul.f32 %v939, %v1111
        %v1324 = vmul.f32 %v940, %v1121
        %v1325 = vmul.f32 %v941, %v1131
        %v1326 = vmul.f32 %v942, %v1141
        %v1327 = vmul.f32 %v943, %v1151
        %v1328 = vmul.f32 %v944, %v1161
        %v1329 = vmul.f32 %v945, %v1171
        %v1330 = vmul.f32 %v946, %v1181
        %v1331 = vmul.f32 %v947, %v1191
        %v1332 = vmul.f32 %v948, %v1201
        %v1333 = vmul.f32 %v949, %v1211
        %v1334 = vmul.f32 %v950, %v1221
        %v1335 = vmul.f32 %v951, %v1231
        %v1336 = vmul.f32 %v952, %v1241
        %v1337 = vmul.f32 %v953, %v1251
        %v1338 = vmul.f32 %v954, %v1261
        %v1339 = vmul.f32 %v955, %v1271
        %v1340 = vmul.f32 %v956, %v1281
        %v1341 = vmul.f32 %v957, %v1291
        %v1342 = vmul.f32 %v958, %v1301
        %v1343 = vmul.f32 %v959, %v1311
        %v1345 = vperm.slane %v606, 0
        %v1347 = vmul.f32 %v1312, %v1345
        %v1348 = vmul.f32 %v1313, %v1345
        %v1349 = vmul.f32 %v1314, %v1345
        %v1350 = vmul.f32 %v1315, %v1345
        %v1351 = vmul.f32 %v1316, %v1345
        %v1352 = vmul.f32 %v1317, %v1345
        %v1353 = vmul.f32 %v1318, %v1345
        %v1354 = vmul.f32 %v1319, %v1345
        %v1355 = vmul.f32 %v1320, %v1345
        %v1356 = vmul.f32 %v1321, %v1345
        %v1357 = vmul.f32 %v1322, %v1345
        %v1358 = vmul.f32 %v1323, %v1345
        %v1359 = vmul.f32 %v1324, %v1345
        %v1360 = vmul.f32 %v1325, %v1345
        %v1361 = vmul.f32 %v1326, %v1345
        %v1362 = vmul.f32 %v1327, %v1345
        %v1363 = vmul.f32 %v1328, %v1345
        %v1364 = vmul.f32 %v1329, %v1345
        %v1365 = vmul.f32 %v1330, %v1345
        %v1366 = vmul.f32 %v1331, %v1345
        %v1367 = vmul.f32 %v1332, %v1345
        %v1368 = vmul.f32 %v1333, %v1345
        %v1369 = vmul.f32 %v1334, %v1345
        %v1370 = vmul.f32 %v1335, %v1345
        %v1371 = vmul.f32 %v1336, %v1345
        %v1372 = vmul.f32 %v1337, %v1345
        %v1373 = vmul.f32 %v1338, %v1345
        %v1374 = vmul.f32 %v1339, %v1345
        %v1375 = vmul.f32 %v1340, %v1345
        %v1376 = vmul.f32 %v1341, %v1345
        %v1377 = vmul.f32 %v1342, %v1345
        %v1378 = vmul.f32 %v1343, %v1345
        %v1380 = vperm.slane %v607, 0
        %v1382 = vadd.f32 %v1347, %v1380
        %v1383 = vadd.f32 %v1348, %v1380
        %v1384 = vadd.f32 %v1349, %v1380
        %v1385 = vadd.f32 %v1350, %v1380
        %v1386 = vadd.f32 %v1351, %v1380
        %v1387 = vadd.f32 %v1352, %v1380
        %v1388 = vadd.f32 %v1353, %v1380
        %v1389 = vadd.f32 %v1354, %v1380
        %v1390 = vadd.f32 %v1355, %v1380
        %v1391 = vadd.f32 %v1356, %v1380
        %v1392 = vadd.f32 %v1357, %v1380
        %v1393 = vadd.f32 %v1358, %v1380
        %v1394 = vadd.f32 %v1359, %v1380
        %v1395 = vadd.f32 %v1360, %v1380
        %v1396 = vadd.f32 %v1361, %v1380
        %v1397 = vadd.f32 %v1362, %v1380
        %v1398 = vadd.f32 %v1363, %v1380
        %v1399 = vadd.f32 %v1364, %v1380
        %v1400 = vadd.f32 %v1365, %v1380
        %v1401 = vadd.f32 %v1366, %v1380
        %v1402 = vadd.f32 %v1367, %v1380
        %v1403 = vadd.f32 %v1368, %v1380
        %v1404 = vadd.f32 %v1369, %v1380
        %v1405 = vadd.f32 %v1370, %v1380
        %v1406 = vadd.f32 %v1371, %v1380
        %v1407 = vadd.f32 %v1372, %v1380
        %v1408 = vadd.f32 %v1373, %v1380
        %v1409 = vadd.f32 %v1374, %v1380
        %v1410 = vadd.f32 %v1375, %v1380
        %v1411 = vadd.f32 %v1376, %v1380
        %v1412 = vadd.f32 %v1377, %v1380
        %v1413 = vadd.f32 %v1378, %v1380
        %v1414 = vmax.f32 %v1382, 0.0
        %v1415 = vmax.f32 %v1383, 0.0
        %v1416 = vmax.f32 %v1384, 0.0
        %v1417 = vmax.f32 %v1385, 0.0
        %v1418 = vmax.f32 %v1386, 0.0
        %v1419 = vmax.f32 %v1387, 0.0
        %v1420 = vmax.f32 %v1388, 0.0
        %v1421 = vmax.f32 %v1389, 0.0
        %v1422 = vmax.f32 %v1390, 0.0
        %v1423 = vmax.f32 %v1391, 0.0
        %v1424 = vmax.f32 %v1392, 0.0
        %v1425 = vmax.f32 %v1393, 0.0
        %v1426 = vmax.f32 %v1394, 0.0
        %v1427 = vmax.f32 %v1395, 0.0
        %v1428 = vmax.f32 %v1396, 0.0
        %v1429 = vmax.f32 %v1397, 0.0
        %v1430 = vmax.f32 %v1398, 0.0
        %v1431 = vmax.f32 %v1399, 0.0
        %v1432 = vmax.f32 %v1400, 0.0
        %v1433 = vmax.f32 %v1401, 0.0
        %v1434 = vmax.f32 %v1402, 0.0
        %v1435 = vmax.f32 %v1403, 0.0
        %v1436 = vmax.f32 %v1404, 0.0
        %v1437 = vmax.f32 %v1405, 0.0
        %v1438 = vmax.f32 %v1406, 0.0
        %v1439 = vmax.f32 %v1407, 0.0
        %v1440 = vmax.f32 %v1408, 0.0
        %v1441 = vmax.f32 %v1409, 0.0
        %v1442 = vmax.f32 %v1410, 0.0
        %v1443 = vmax.f32 %v1411, 0.0
        %v1444 = vmax.f32 %v1412, 0.0
        %v1445 = vmax.f32 %v1413, 0.0
        %v1446 = vadd.f32 %v1414, %v527
        %v1447 = vadd.f32 %v1415, %v529
        %v1448 = vadd.f32 %v1416, %v532
        %v1449 = vadd.f32 %v1417, %v534
        %v1450 = vadd.f32 %v1418, %v537
        %v1451 = vadd.f32 %v1419, %v539
        %v1452 = vadd.f32 %v1420, %v542
        %v1453 = vadd.f32 %v1421, %v544
        %v1454 = vadd.f32 %v1422, %v547
        %v1455 = vadd.f32 %v1423, %v549
        %v1456 = vadd.f32 %v1424, %v552
        %v1457 = vadd.f32 %v1425, %v554
        %v1458 = vadd.f32 %v1426, %v557
        %v1459 = vadd.f32 %v1427, %v559
        %v1460 = vadd.f32 %v1428, %v562
        %v1461 = vadd.f32 %v1429, %v564
        %v1462 = vadd.f32 %v1430, %v567
        %v1463 = vadd.f32 %v1431, %v569
        %v1464 = vadd.f32 %v1432, %v572
        %v1465 = vadd.f32 %v1433, %v574
        %v1466 = vadd.f32 %v1434, %v577
        %v1467 = vadd.f32 %v1435, %v579
        %v1468 = vadd.f32 %v1436, %v582
        %v1469 = vadd.f32 %v1437, %v584
        %v1470 = vadd.f32 %v1438, %v587
        %v1471 = vadd.f32 %v1439, %v589
        %v1472 = vadd.f32 %v1440, %v592
        %v1473 = vadd.f32 %v1441, %v594
        %v1474 = vadd.f32 %v1442, %v597
        %v1475 = vadd.f32 %v1443, %v599
        %v1476 = vadd.f32 %v1444, %v602
        %v1477 = vadd.f32 %v1445, %v604
        %1478 = vst [vmem:[%s275] sm:$0xff] %v1446
        %1479 = vst [vmem:[%s275 + $0x8] sm:$0xff] %v1447
        %1480 = vst [vmem:[%s275 + $0x10] sm:$0xff] %v1448
        %1481 = vst [vmem:[%s275 + $0x18] sm:$0xff] %v1449
        %1482 = vst [vmem:[%s275 + $0x20] sm:$0xff] %v1450
        %1483 = vst [vmem:[%s275 + $0x28] sm:$0xff] %v1451
        %1484 = vst [vmem:[%s275 + $0x30] sm:$0xff] %v1452
        %1485 = vst [vmem:[%s275 + $0x38] sm:$0xff] %v1453
        %1486 = vst [vmem:[%s275 + $0x40] sm:$0xff] %v1454
        %1487 = vst [vmem:[%s275 + $0x48] sm:$0xff] %v1455
        %1488 = vst [vmem:[%s275 + $0x50] sm:$0xff] %v1456
        %1489 = vst [vmem:[%s275 + $0x58] sm:$0xff] %v1457
        %1490 = vst [vmem:[%s275 + $0x60] sm:$0xff] %v1458
        %1491 = vst [vmem:[%s275 + $0x68] sm:$0xff] %v1459
        %1492 = vst [vmem:[%s275 + $0x70] sm:$0xff] %v1460
        %1493 = vst [vmem:[%s275 + $0x78] sm:$0xff] %v1461
        %1494 = vst [vmem:[%s275 + $0x80] sm:$0xff] %v1462
        %1495 = vst [vmem:[%s275 + $0x88] sm:$0xff] %v1463
        %1496 = vst [vmem:[%s275 + $0x90] sm:$0xff] %v1464
        %1497 = vst [vmem:[%s275 + $0x98] sm:$0xff] %v1465
        %1498 = vst [vmem:[%s275 + $0xa0] sm:$0xff] %v1466
        %1499 = vst [vmem:[%s275 + $0xa8] sm:$0xff] %v1467
        %1500 = vst [vmem:[%s275 + $0xb0] sm:$0xff] %v1468
        %1501 = vst [vmem:[%s275 + $0xb8] sm:$0xff] %v1469
        %1502 = vst [vmem:[%s275 + $0xc0] sm:$0xff] %v1470
        %1503 = vst [vmem:[%s275 + $0xc8] sm:$0xff] %v1471
        %1504 = vst [vmem:[%s275 + $0xd0] sm:$0xff] %v1472
        %1505 = vst [vmem:[%s275 + $0xd8] sm:$0xff] %v1473
        %1506 = vst [vmem:[%s275 + $0xe0] sm:$0xff] %v1474
        %1507 = vst [vmem:[%s275 + $0xe8] sm:$0xff] %v1475
        %1508 = vst [vmem:[%s275 + $0xf0] sm:$0xff] %v1476
        %1509 = vst [vmem:[%s275 + $0xf8] sm:$0xff] %v1477
        %s1510 = sand.u32 %s141, 1
        %s1511 = scalar_lea.sflag [#allocation4], %s1510
        %s1512 = sand.u32 %s141, 1
        %s1513 = smul.addr %s1512, 256
        %s1514 = scalar_lea.vmem [#allocation8], %s1513
        // Predicated region
        $region53: #{tpu_custom_call.1} parent=39 // pred_check
          %p1515 = pneg %p151
        $region54: #{tpu_custom_call.1} parent=39 // pred_check_branch
          %1517 = sbr.rel (%p1515) target = $region56
        $region55: #{tpu_custom_call.1} parent=39 // pred_region
          %s1518 = smul.u32 32, %s23
          %1520 = vsyncadd %s1511, 0
          %s1521 = smul.addr %s1518, 8
          %s1522 = scalar_lea.hbm %s5, %s1521
          %s1523 = sshll.u32 %s1514, 4
          %s1524 = int_to_ptr.vmem [resolvable:$true] %s1523
          %s1525 = sshll.u32 %s1522, 4
          %s1526 = int_to_ptr.hbm [resolvable:$true] %s1525
          %1531 = dma.vmem_to_hbm [thread:$0]  %s1524, 4096, %s1526, %s1511, 128, 128, 8
        $region56: #{tpu_custom_call.1} parent=39 // pred_fallthru
          _
      $region40: #{tpu_custom_call.1} parent=5 // pred_fallthru
        _
      %p1532 = scmp.le.s32.totalorder 2, %s18
      // Predicated region
      $region57: #{tpu_custom_call.1} parent=5 // pred_check
        %p1533 = pneg %p1532
      $region58: #{tpu_custom_call.1} parent=5 // pred_check_branch
        %1535 = sbr.rel (%p1533) target = $region60
      $region59: #{tpu_custom_call.1} parent=5 // pred_region
        %s1536 = ssub.s32 %s18, 2
        // Predicated region
        $region61: #{tpu_custom_call.1} parent=59 // pred_check
          %p1537 = pneg %p157
        $region62: #{tpu_custom_call.1} parent=59 // pred_check_branch
          %1539 = sbr.rel (%p1537) target = $region64
        $region63: #{tpu_custom_call.1} parent=59 // pred_region
          %s1540 = sand.u32 %s142, 1
          %s1541 = scalar_lea.sflag [#allocation4], %s1540
          %s1542 = sand.u32 %s142, 1
          %s1543 = smul.addr %s1542, 256
          %s1544 = scalar_lea.vmem [#allocation8], %s1543
          %1546 = dma.done %s1541, 4096
        $region64: #{tpu_custom_call.1} parent=59 // pred_fallthru
          _
      $region60: #{tpu_custom_call.1} parent=5 // pred_fallthru
        _
    $region6: #{tpu_custom_call.1} parent=1 // loop_footer
      %s22 = sadd.s32 1, %s18
    $region7: #{tpu_custom_call.1} parent=1 // loop_footer_branch
      %17 = sbr.rel target = $region3
    $region8: #{tpu_custom_call.1} parent=1 // loop_exit
      _
    %1547 = vsyncpa [#allocation3], 1
    %s1548 = scalar_lea.sflag [#allocation3], 1
    %1549 = vsyncpa %s1548, 1
    %1550 = vsyncpa [#allocation6], 1
    %1551 = vsyncpa [#allocation4], 1
    %s1552 = scalar_lea.sflag [#allocation4], 1
    %1553 = vsyncpa %s1552, 1

</llo_original>
